<compile_context>
chip_gen: v5e
topology: v5e:2x2
jax: 0.10.0
libtpu: 0.0.40
codegen_flags: <defaults>
</compile_context>

<pallas_src>
import functools

import jax
import jax.numpy as jnp
from jax.experimental import pallas as pl
from jax.experimental.pallas import tpu as pltpu


# ----------------------------------------------------------------------------
# Fused Pallas kernel: fc_in -> (grid over depth) bi-LSTM layers -> fc_out
# ----------------------------------------------------------------------------
def _make_graves_kernel(T, B, H):
    H3, H4 = 3 * H, 4 * H

    def kernel(x_ref, win_ref, bin_ref, wih_ref, whh_ref, blstm_ref,
               wout_ref, bout_ref, out_ref, act_ref, gates_ref):
        d = pl.program_id(0)

        # ---- fc_in (first grid step only): (T*B, F) @ (F, 2H) + b -> bf16 act ----
        @pl.when(d == 0)
        def _():
            act_ref[...] = (
                jnp.dot(x_ref[...], win_ref[...],
                        preferred_element_type=jnp.float32)
                + bin_ref[...]
            ).astype(act_ref.dtype)

        # ---- layer d: hoisted input projection for BOTH directions (one matmul) ----
        wih = wih_ref[0]        # (2H, 8H) bf16, cols = [fwd i,f,o,g | rev i,f,o,g]
        whh = whh_ref[0]        # (2H, 8H) bf16 block-diag [Whh_f 0; 0 Whh_r]
        blstm = blstm_ref[0]    # (1, 8H)  f32 folded (bih + bhh) biases
        gates_ref[...] = (
            jnp.dot(act_ref[...], wih, preferred_element_type=jnp.float32) + blstm
        ).astype(gates_ref.dtype)          # (T*B, 8H) bf16

        def row(t):
            off = t * B
            return off if isinstance(off, int) else pl.multiple_of(off, B)

        def cell(g, c):
            # g: (B, 4H) f32, gate order [i | f | o | g].
            sig = jax.nn.sigmoid(g[:, :H3])
            g_g = jnp.tanh(g[:, H3:])
            i_g, f_g, o_g = sig[:, :H], sig[:, H:2 * H], sig[:, 2 * H:]
            c_new = f_g * c + i_g * g_g
            h_new = o_g * jnp.tanh(c_new)
            return h_new, c_new

        def step(s, carry):
            h_cat, c_f, c_r = carry
            tr = T - 1 - s
            rf, rr = row(s), row(tr)
            # One fused recurrent matmul for both directions (block-diag W_hh).
            rec = jnp.dot(h_cat, whh, preferred_element_type=jnp.float32)  # (B, 8H)
            g_f = rec[:, :H4] + gates_ref[pl.ds(rf, B), pl.ds(0, H4)].astype(jnp.float32)
            g_r = rec[:, H4:] + gates_ref[pl.ds(rr, B), pl.ds(H4, H4)].astype(jnp.float32)
            h_f, c_f = cell(g_f, c_f)
            h_r, c_r = cell(g_r, c_r)
            h_f = h_f.astype(act_ref.dtype)
            h_r = h_r.astype(act_ref.dtype)
            # Write both directions straight into the next layer's input buffer.
            # (Safe: this layer's input was fully consumed by the gates matmul above.)
            act_ref[pl.ds(rf, B), pl.ds(0, H)] = h_f
            act_ref[pl.ds(rr, B), pl.ds(H, H)] = h_r
            return jnp.concatenate([h_f, h_r], axis=1), c_f, c_r

        carry = (jnp.zeros((B, 2 * H), act_ref.dtype),   # h_cat = [h_f | h_r]
                 jnp.zeros((B, H), jnp.float32),          # c_f
                 jnp.zeros((B, H), jnp.float32))          # c_r
        if T <= 16:                       # small T: full static unroll
            for s in range(T):
                carry = step(s, carry)
        else:                             # large T: bounded unroll keeps vregs sane
            carry = jax.lax.fori_loop(0, T, step, carry, unroll=4)

        # ---- fc_out (last grid step only), lane-dense padded output ----
        @pl.when(d == pl.num_programs(0) - 1)
        def _():
            out_ref[...] = (
                jnp.dot(act_ref[...], wout_ref[...],
                        preferred_element_type=jnp.float32)
                + bout_ref[...]
            ).astype(out_ref.dtype)

    return kernel


# ----------------------------------------------------------------------------
# Wrapper
# ----------------------------------------------------------------------------
def graves_forward(x, params, nclass):
    """x: (1, B, imgH, W) float32 -> (W, B, nclass), matching GravesNet.forward."""
    x = jnp.squeeze(x, axis=0)            # (B, imgH, W)
    x = jnp.transpose(x, (2, 0, 1))       # (T=W, B, imgH) time-major
    T, B, F = x.shape
    depth, _, H8 = params["wih"].shape
    H = H8 // 8
    nout_pad = params["w_out"].shape[-1]

    # Pad batch to a sublane multiple so the per-step h stores are sublane-aligned.
    B_pad = max(8, ((B + 7) // 8) * 8)
    x = jnp.pad(x, ((0, 0), (0, B_pad - B), (0, 0)))
    x2d = x.reshape(T * B_pad, F).astype(jnp.bfloat16)

    args = (x2d, params["w_in"], params["b_in"],
            params["wih"], params["whh"], params["b_lstm"],
            params["w_out"], params["b_out"])

    # Explicit VMEM budget: inputs/output with double-buffer slack + scratch + headroom.
    scratch_bytes = T * B_pad * 2 * H * 2 + T * B_pad * 8 * H * 2        # bf16 scratch
    out_bytes = T * B_pad * nout_pad * 4
    in_bytes = sum(int(a.size) * a.dtype.itemsize for a in args)
    vmem_limit = int(2 * (in_bytes + out_bytes) + scratch_bytes + (2 << 20))
    vmem_limit = min(max(vmem_limit, 16 << 20), 128 << 20)

    grid_spec = pltpu.PrefetchScalarGridSpec(
        num_scalar_prefetch=0,
        grid=(depth,),
        in_specs=[
            pl.BlockSpec((T * B_pad, F), lambda d: (0, 0)),          # x (resident)
            pl.BlockSpec(params["w_in"].shape, lambda d: (0, 0)),    # W_in
            pl.BlockSpec(params["b_in"].shape, lambda d: (0, 0)),    # b_in
            pl.BlockSpec((1, 2 * H, 8 * H), lambda d: (d, 0, 0)),    # W_ih  (streamed)
            pl.BlockSpec((1, 2 * H, 8 * H), lambda d: (d, 0, 0)),    # W_hh  (streamed)
            pl.BlockSpec((1, 1, 8 * H), lambda d: (d, 0, 0)),        # biases (streamed)
            pl.BlockSpec(params["w_out"].shape, lambda d: (0, 0)),   # W_out
            pl.BlockSpec(params["b_out"].shape, lambda d: (0, 0)),   # b_out
        ],
        out_specs=pl.BlockSpec((T * B_pad, nout_pad), lambda d: (0, 0)),
        scratch_shapes=[
            pltpu.VMEM((T * B_pad, 2 * H), jnp.bfloat16),   # layer activations (persist)
            pltpu.VMEM((T * B_pad, 8 * H), jnp.bfloat16),   # hoisted gate projections
        ],
    )

    out2d = pl.pallas_call(
        _make_graves_kernel(T, B_pad, H),
        out_shape=jax.ShapeDtypeStruct((T * B_pad, nout_pad), jnp.float32),
        grid_spec=grid_spec,
        compiler_params=pltpu.CompilerParams(
            dimension_semantics=("arbitrary",),     # depth is a serial dependency
            vmem_limit_bytes=vmem_limit,
        ),
    )(*args)

    return out2d.reshape(T, B_pad, nout_pad)[:, :B, :nclass]


# ----------------------------------------------------------------------------
# Parameter construction (PyTorch layout) + one-time packing for the kernel
# ----------------------------------------------------------------------------
def make_params(key, imgH, nh, nclass, depth):
    def uni(k, shape, scale):
        return jax.random.uniform(k, shape, jnp.float32, -scale, scale)

    keys = jax.random.split(key, 2 + depth)
    s_lin = 1.0 / jnp.sqrt(imgH)
    s_lstm = 1.0 / jnp.sqrt(nh)
    s_out = 1.0 / jnp.sqrt(2 * nh)

    kin = jax.random.split(keys[0], 2)
    kout = jax.random.split(keys[1], 2)
    params = {
        "fc_in_w": uni(kin[0], (2 * nh, imgH), s_lin),
        "fc_in_b": uni(kin[1], (2 * nh,), s_lin),
        "fc_out_w": uni(kout[0], (nclass, 2 * nh), s_out),
        "fc_out_b": uni(kout[1], (nclass,), s_out),
        "lstm": [],
    }
    for d in range(depth):
        kl = jax.random.split(keys[2 + d], 8)
        params["lstm"].append({
            "wih_f": uni(kl[0], (4 * nh, 2 * nh), s_lstm),
            "whh_f": uni(kl[1], (4 * nh, nh), s_lstm),
            "bih_f": uni(kl[2], (4 * nh,), s_lstm),
            "bhh_f": uni(kl[3], (4 * nh,), s_lstm),
            "wih_r": uni(kl[4], (4 * nh, 2 * nh), s_lstm),
            "whh_r": uni(kl[5], (4 * nh, nh), s_lstm),
            "bih_r": uni(kl[6], (4 * nh,), s_lstm),
            "bhh_r": uni(kl[7], (4 * nh,), s_lstm),
        })
    return params


def pack_params(p):
    """Pre-transpose / concat / bias-fold / gate-reorder once; bf16 MXU operands."""
    nh2 = p["fc_in_w"].shape[0]            # 2H
    H = nh2 // 2
    nclass = p["fc_out_w"].shape[0]
    nout_pad = ((nclass + 127) // 128) * 128   # lane-dense fc_out output

    def reorder(w):                        # PyTorch gate rows [i,f,g,o] -> [i,f,o,g]
        return jnp.concatenate([w[:2 * H], w[3 * H:], w[2 * H:3 * H]], axis=0)

    wih, whh, b_lstm = [], [], []
    for lp in p["lstm"]:
        wih.append(jnp.concatenate(
            [reorder(lp["wih_f"]).T, reorder(lp["wih_r"]).T], axis=1))       # (2H, 8H)
        bd = jnp.zeros((nh2, 8 * H), jnp.float32)
        bd = bd.at[:H, :4 * H].set(reorder(lp["whh_f"]).T)                   # block-diag
        bd = bd.at[H:, 4 * H:].set(reorder(lp["whh_r"]).T)
        whh.append(bd)
        b_lstm.append(jnp.concatenate(
            [reorder(lp["bih_f"] + lp["bhh_f"]),
             reorder(lp["bih_r"] + lp["bhh_r"])]).reshape(1, 8 * H))

    w_out = jnp.zeros((nh2, nout_pad), jnp.float32).at[:, :nclass].set(p["fc_out_w"].T)
    b_out = jnp.zeros((1, nout_pad), jnp.float32).at[:, :nclass].set(p["fc_out_b"])

    return {
        "w_in": p["fc_in_w"].T.astype(jnp.bfloat16),          # (imgH, 2H)
        "b_in": p["fc_in_b"].reshape(1, nh2),                 # (1, 2H)  f32
        "wih": jnp.stack(wih).astype(jnp.bfloat16),           # (depth, 2H, 8H)
        "whh": jnp.stack(whh).astype(jnp.bfloat16),           # (depth, 2H, 8H) blockdiag
        "b_lstm": jnp.stack(b_lstm),                          # (depth, 1, 8H) f32
        "w_out": w_out.astype(jnp.bfloat16),                  # (2H, nout_pad)
        "b_out": b_out,                                       # (1, nout_pad) f32
    }


# ----------------------------------------------------------------------------
if __name__ == "__main__":
    imgH, nh, nclass, depth = 16, 32, 10, 2
    B, W = 2, 8   # batch, sequence width (T = W)

    key = jax.random.PRNGKey(0)
    k_x, k_p = jax.random.split(key)
    x = jax.random.normal(k_x, (1, B, imgH, W), jnp.float32)
    packed = pack_params(make_params(k_p, imgH, nh, nclass, depth))

    fwd = jax.jit(functools.partial(graves_forward, params=packed, nclass=nclass))
    out = fwd(x)
    jax.block_until_ready(out)
    assert out.shape == (W, B, nclass), out.shape
    assert bool(jnp.all(jnp.isfinite(out)))
    print("KERNEL_OK")
</pallas_src>

<mosaic_0001>
module attributes {stable_mosaic.version = 11 : i64} {
  func.func @kernel(%arg0: i32, %arg1: memref<64x16xbf16, #tpu.memory_space<vmem>>, %arg2: memref<16x64xbf16, #tpu.memory_space<vmem>>, %arg3: memref<1x64xf32, #tpu.memory_space<vmem>>, %arg4: memref<1x64x256xbf16, #tpu.memory_space<vmem>>, %arg5: memref<1x64x256xbf16, #tpu.memory_space<vmem>>, %arg6: memref<1x1x256xf32, #tpu.memory_space<vmem>>, %arg7: memref<64x128xbf16, #tpu.memory_space<vmem>>, %arg8: memref<1x128xf32, #tpu.memory_space<vmem>>, %arg9: memref<64x128xf32, #tpu.memory_space<vmem>>, %arg10: memref<64x64xbf16, #tpu.memory_space<vmem>>, %arg11: memref<64x256xbf16, #tpu.memory_space<vmem>>) attributes {dimension_semantics = [#tpu.dimension_semantics<arbitrary>], iteration_bounds = array<i64: 2>, scalar_prefetch = 0 : i64, scratch_operands = 2 : i64, tpu.core_type = #tpu.core_type<tc>, window_params = [{pipeline_mode = #tpu.pipeline_mode<synchronous>, transform_indices = @transform_0, window_bounds = array<i64: 64, 16>}, {pipeline_mode = #tpu.pipeline_mode<synchronous>, transform_indices = @transform_1, window_bounds = array<i64: 16, 64>}, {pipeline_mode = #tpu.pipeline_mode<synchronous>, transform_indices = @transform_2, window_bounds = array<i64: 1, 64>}, {transform_indices = @transform_3, window_bounds = array<i64: 1, 64, 256>}, {transform_indices = @transform_4, window_bounds = array<i64: 1, 64, 256>}, {transform_indices = @transform_5, window_bounds = array<i64: 1, 1, 256>}, {pipeline_mode = #tpu.pipeline_mode<synchronous>, transform_indices = @transform_6, window_bounds = array<i64: 64, 128>}, {pipeline_mode = #tpu.pipeline_mode<synchronous>, transform_indices = @transform_7, window_bounds = array<i64: 1, 128>}, {pipeline_mode = #tpu.pipeline_mode<synchronous>, transform_indices = @transform_8, window_bounds = array<i64: 64, 128>}]} {
    %c0_i32 = arith.constant 0 : i32
    %0 = arith.cmpi eq, %arg0, %c0_i32 : i32
    %1 = arith.extui %0 : i1 to i32
    %c0_i32_0 = arith.constant 0 : i32
    %2 = arith.cmpi ne, %1, %c0_i32_0 : i32
    scf.if %2 {
      %c0_97 = arith.constant 0 : index
      %c0_98 = arith.constant 0 : index
      %388 = vector.load %arg1[%c0_97, %c0_98] : memref<64x16xbf16, #tpu.memory_space<vmem>>, vector<64x16xbf16>
      %c0_99 = arith.constant 0 : index
      %c0_100 = arith.constant 0 : index
      %389 = vector.load %arg2[%c0_99, %c0_100] : memref<16x64xbf16, #tpu.memory_space<vmem>>, vector<16x64xbf16>
      %cst_101 = arith.constant dense<0.000000e+00> : vector<64x64xf32>
      %390 = tpu.matmul %388, %389, %cst_101 {dimension_numbers = #tpu.dot_dimension_numbers<[1], [0], [0], [1], [0, 0, 1, 1], [], []>} : vector<64x16xbf16>, vector<16x64xbf16>, vector<64x64xf32> -> vector<64x64xf32>
      %c0_102 = arith.constant 0 : index
      %c0_103 = arith.constant 0 : index
      %391 = vector.load %arg3[%c0_102, %c0_103] : memref<1x64xf32, #tpu.memory_space<vmem>>, vector<1x64xf32>
      %392 = vector.broadcast %391 : vector<1x64xf32> to vector<64x64xf32>
      %393 = arith.addf %390, %392 : vector<64x64xf32>
      %394 = arith.truncf %393 : vector<64x64xf32> to vector<64x64xbf16>
      %c0_104 = arith.constant 0 : index
      %c0_105 = arith.constant 0 : index
      %395 = vector.load %arg10[%c0_104, %c0_105] : memref<64x64xbf16, #tpu.memory_space<vmem>>, vector<64x64xbf16>
      tpu.vector_store %arg10[%c0_104, %c0_105], %394 {strides = array<i32>} : memref<64x64xbf16, #tpu.memory_space<vmem>>, vector<64x64xbf16>,
    } else {
    }
    %c0 = arith.constant 0 : index
    %c0_1 = arith.constant 0 : index
    %c0_2 = arith.constant 0 : index
    %3 = vector.load %arg4[%c0, %c0_1, %c0_2] : memref<1x64x256xbf16, #tpu.memory_space<vmem>>, vector<1x64x256xbf16>
    %4 = vector.shape_cast %3 : vector<1x64x256xbf16> to vector<64x256xbf16>
    %c0_3 = arith.constant 0 : index
    %c0_4 = arith.constant 0 : index
    %c0_5 = arith.constant 0 : index
    %5 = vector.load %arg5[%c0_3, %c0_4, %c0_5] : memref<1x64x256xbf16, #tpu.memory_space<vmem>>, vector<1x64x256xbf16>
    %6 = vector.shape_cast %5 : vector<1x64x256xbf16> to vector<64x256xbf16>
    %c0_6 = arith.constant 0 : index
    %c0_7 = arith.constant 0 : index
    %c0_8 = arith.constant 0 : index
    %7 = vector.load %arg6[%c0_6, %c0_7, %c0_8] : memref<1x1x256xf32, #tpu.memory_space<vmem>>, vector<1x1x256xf32>
    %8 = vector.shape_cast %7 : vector<1x1x256xf32> to vector<1x256xf32>
    %c0_9 = arith.constant 0 : index
    %c0_10 = arith.constant 0 : index
    %9 = vector.load %arg10[%c0_9, %c0_10] : memref<64x64xbf16, #tpu.memory_space<vmem>>, vector<64x64xbf16>
    %cst = arith.constant dense<0.000000e+00> : vector<64x256xf32>
    %10 = tpu.matmul %9, %4, %cst {dimension_numbers = #tpu.dot_dimension_numbers<[1], [0], [0], [1], [0, 0, 1, 1], [], []>} : vector<64x64xbf16>, vector<64x256xbf16>, vector<64x256xf32> -> vector<64x256xf32>
    %11 = vector.broadcast %8 : vector<1x256xf32> to vector<64x256xf32>
    %12 = arith.addf %10, %11 : vector<64x256xf32>
    %13 = arith.truncf %12 : vector<64x256xf32> to vector<64x256xbf16>
    %c0_11 = arith.constant 0 : index
    %c0_12 = arith.constant 0 : index
    %14 = vector.load %arg11[%c0_11, %c0_12] : memref<64x256xbf16, #tpu.memory_space<vmem>>, vector<64x256xbf16>
    tpu.vector_store %arg11[%c0_11, %c0_12], %13 {strides = array<i32>} : memref<64x256xbf16, #tpu.memory_space<vmem>>, vector<64x256xbf16>,
    %cst_13 = arith.constant 0.000000e+00 : bf16
    %15 = vector.broadcast %cst_13 : bf16 to vector<8x64xbf16>
    %cst_14 = arith.constant 0.000000e+00 : f32
    %16 = vector.broadcast %cst_14 : f32 to vector<8x32xf32>
    %cst_15 = arith.constant 0.000000e+00 : f32
    %17 = vector.broadcast %cst_15 : f32 to vector<8x32xf32>
    %cst_16 = arith.constant dense<0.000000e+00> : vector<8x256xf32>
    %18 = tpu.matmul %15, %6, %cst_16 {dimension_numbers = #tpu.dot_dimension_numbers<[1], [0], [0], [1], [0, 0, 1, 1], [], []>} : vector<8x64xbf16>, vector<64x256xbf16>, vector<8x256xf32> -> vector<8x256xf32>
    %19 = vector.extract_strided_slice %18 {offsets = [0, 0], sizes = [8, 128], strides = [1, 1]} : vector<8x256xf32> to vector<8x128xf32>
    %c0_17 = arith.constant 0 : index
    %c0_18 = arith.constant 0 : index
    %20 = vector.load %arg11[%c0_17, %c0_18] : memref<64x256xbf16, #tpu.memory_space<vmem>>, vector<8x128xbf16>
    %21 = arith.extf %20 : vector<8x128xbf16> to vector<8x128xf32>
    %22 = arith.addf %19, %21 : vector<8x128xf32>
    %23 = vector.extract_strided_slice %18 {offsets = [0, 128], sizes = [8, 128], strides = [1, 1]} : vector<8x256xf32> to vector<8x128xf32>
    %c56 = arith.constant 56 : index
    %c128 = arith.constant 128 : index
    %24 = vector.load %arg11[%c56, %c128] : memref<64x256xbf16, #tpu.memory_space<vmem>>, vector<8x128xbf16>
    %25 = arith.extf %24 : vector<8x128xbf16> to vector<8x128xf32>
    %26 = arith.addf %23, %25 : vector<8x128xf32>
    %27 = vector.extract_strided_slice %22 {offsets = [0, 0], sizes = [8, 96], strides = [1, 1]} : vector<8x128xf32> to vector<8x96xf32>
    %28 = arith.negf %27 : vector<8x96xf32>
    %29 = math.exp %28 : vector<8x96xf32>
    %cst_19 = arith.constant 1.000000e+00 : f32
    %30 = vector.broadcast %cst_19 : f32 to vector<8x96xf32>
    %31 = arith.addf %30, %29 : vector<8x96xf32>
    %32 = arith.divf %30, %31 : vector<8x96xf32>
    %33 = vector.extract_strided_slice %22 {offsets = [0, 96], sizes = [8, 32], strides = [1, 1]} : vector<8x128xf32> to vector<8x32xf32>
    %34 = math.tanh %33 : vector<8x32xf32>
    %35 = vector.extract_strided_slice %32 {offsets = [0, 0], sizes = [8, 32], strides = [1, 1]} : vector<8x96xf32> to vector<8x32xf32>
    %36 = vector.extract_strided_slice %32 {offsets = [0, 32], sizes = [8, 32], strides = [1, 1]} : vector<8x96xf32> to vector<8x32xf32>
    %37 = vector.extract_strided_slice %32 {offsets = [0, 64], sizes = [8, 32], strides = [1, 1]} : vector<8x96xf32> to vector<8x32xf32>
    %38 = arith.mulf %36, %16 : vector<8x32xf32>
    %39 = arith.mulf %35, %34 : vector<8x32xf32>
    %40 = arith.addf %38, %39 : vector<8x32xf32>
    %41 = math.tanh %40 : vector<8x32xf32>
    %42 = arith.mulf %37, %41 : vector<8x32xf32>
    %43 = vector.extract_strided_slice %26 {offsets = [0, 0], sizes = [8, 96], strides = [1, 1]} : vector<8x128xf32> to vector<8x96xf32>
    %44 = arith.negf %43 : vector<8x96xf32>
    %45 = math.exp %44 : vector<8x96xf32>
    %cst_20 = arith.constant 1.000000e+00 : f32
    %46 = vector.broadcast %cst_20 : f32 to vector<8x96xf32>
    %47 = arith.addf %46, %45 : vector<8x96xf32>
    %48 = arith.divf %46, %47 : vector<8x96xf32>
    %49 = vector.extract_strided_slice %26 {offsets = [0, 96], sizes = [8, 32], strides = [1, 1]} : vector<8x128xf32> to vector<8x32xf32>
    %50 = math.tanh %49 : vector<8x32xf32>
    %51 = vector.extract_strided_slice %48 {offsets = [0, 0], sizes = [8, 32], strides = [1, 1]} : vector<8x96xf32> to vector<8x32xf32>
    %52 = vector.extract_strided_slice %48 {offsets = [0, 32], sizes = [8, 32], strides = [1, 1]} : vector<8x96xf32> to vector<8x32xf32>
    %53 = vector.extract_strided_slice %48 {offsets = [0, 64], sizes = [8, 32], strides = [1, 1]} : vector<8x96xf32> to vector<8x32xf32>
    %54 = arith.mulf %52, %17 : vector<8x32xf32>
    %55 = arith.mulf %51, %50 : vector<8x32xf32>
    %56 = arith.addf %54, %55 : vector<8x32xf32>
    %57 = math.tanh %56 : vector<8x32xf32>
    %58 = arith.mulf %53, %57 : vector<8x32xf32>
    %59 = arith.truncf %42 : vector<8x32xf32> to vector<8x32xbf16>
    %60 = arith.truncf %58 : vector<8x32xf32> to vector<8x32xbf16>
    %c0_21 = arith.constant 0 : index
    %c0_22 = arith.constant 0 : index
    %61 = vector.load %arg10[%c0_21, %c0_22] : memref<64x64xbf16, #tpu.memory_space<vmem>>, vector<8x32xbf16>
    tpu.vector_store %arg10[%c0_21, %c0_22], %59 {strides = array<i32>} : memref<64x64xbf16, #tpu.memory_space<vmem>>, vector<8x32xbf16>,
    %c56_23 = arith.constant 56 : index
    %c32 = arith.constant 32 : index
    %62 = vector.load %arg10[%c56_23, %c32] : memref<64x64xbf16, #tpu.memory_space<vmem>>, vector<8x32xbf16>
    tpu.vector_store %arg10[%c56_23, %c32], %60 {strides = array<i32>} : memref<64x64xbf16, #tpu.memory_space<vmem>>, vector<8x32xbf16>,
    %63 = tpu.concatenate %59, %60 in 1 : vector<8x32xbf16>, vector<8x32xbf16> -> vector<8x64xbf16>
    %cst_24 = arith.constant dense<0.000000e+00> : vector<8x256xf32>
    %64 = tpu.matmul %63, %6, %cst_24 {dimension_numbers = #tpu.dot_dimension_numbers<[1], [0], [0], [1], [0, 0, 1, 1], [], []>} : vector<8x64xbf16>, vector<64x256xbf16>, vector<8x256xf32> -> vector<8x256xf32>
    %65 = vector.extract_strided_slice %64 {offsets = [0, 0], sizes = [8, 128], strides = [1, 1]} : vector<8x256xf32> to vector<8x128xf32>
    %c8 = arith.constant 8 : index
    %c0_25 = arith.constant 0 : index
    %66 = vector.load %arg11[%c8, %c0_25] : memref<64x256xbf16, #tpu.memory_space<vmem>>, vector<8x128xbf16>
    %67 = arith.extf %66 : vector<8x128xbf16> to vector<8x128xf32>
    %68 = arith.addf %65, %67 : vector<8x128xf32>
    %69 = vector.extract_strided_slice %64 {offsets = [0, 128], sizes = [8, 128], strides = [1, 1]} : vector<8x256xf32> to vector<8x128xf32>
    %c48 = arith.constant 48 : index
    %c128_26 = arith.constant 128 : index
    %70 = vector.load %arg11[%c48, %c128_26] : memref<64x256xbf16, #tpu.memory_space<vmem>>, vector<8x128xbf16>
    %71 = arith.extf %70 : vector<8x128xbf16> to vector<8x128xf32>
    %72 = arith.addf %69, %71 : vector<8x128xf32>
    %73 = vector.extract_strided_slice %68 {offsets = [0, 0], sizes = [8, 96], strides = [1, 1]} : vector<8x128xf32> to vector<8x96xf32>
    %74 = arith.negf %73 : vector<8x96xf32>
    %75 = math.exp %74 : vector<8x96xf32>
    %cst_27 = arith.constant 1.000000e+00 : f32
    %76 = vector.broadcast %cst_27 : f32 to vector<8x96xf32>
    %77 = arith.addf %76, %75 : vector<8x96xf32>
    %78 = arith.divf %76, %77 : vector<8x96xf32>
    %79 = vector.extract_strided_slice %68 {offsets = [0, 96], sizes = [8, 32], strides = [1, 1]} : vector<8x128xf32> to vector<8x32xf32>
    %80 = math.tanh %79 : vector<8x32xf32>
    %81 = vector.extract_strided_slice %78 {offsets = [0, 0], sizes = [8, 32], strides = [1, 1]} : vector<8x96xf32> to vector<8x32xf32>
    %82 = vector.extract_strided_slice %78 {offsets = [0, 32], sizes = [8, 32], strides = [1, 1]} : vector<8x96xf32> to vector<8x32xf32>
    %83 = vector.extract_strided_slice %78 {offsets = [0, 64], sizes = [8, 32], strides = [1, 1]} : vector<8x96xf32> to vector<8x32xf32>
    %84 = arith.mulf %82, %40 : vector<8x32xf32>
    %85 = arith.mulf %81, %80 : vector<8x32xf32>
    %86 = arith.addf %84, %85 : vector<8x32xf32>
    %87 = math.tanh %86 : vector<8x32xf32>
    %88 = arith.mulf %83, %87 : vector<8x32xf32>
    %89 = vector.extract_strided_slice %72 {offsets = [0, 0], sizes = [8, 96], strides = [1, 1]} : vector<8x128xf32> to vector<8x96xf32>
    %90 = arith.negf %89 : vector<8x96xf32>
    %91 = math.exp %90 : vector<8x96xf32>
    %cst_28 = arith.constant 1.000000e+00 : f32
    %92 = vector.broadcast %cst_28 : f32 to vector<8x96xf32>
    %93 = arith.addf %92, %91 : vector<8x96xf32>
    %94 = arith.divf %92, %93 : vector<8x96xf32>
    %95 = vector.extract_strided_slice %72 {offsets = [0, 96], sizes = [8, 32], strides = [1, 1]} : vector<8x128xf32> to vector<8x32xf32>
    %96 = math.tanh %95 : vector<8x32xf32>
    %97 = vector.extract_strided_slice %94 {offsets = [0, 0], sizes = [8, 32], strides = [1, 1]} : vector<8x96xf32> to vector<8x32xf32>
    %98 = vector.extract_strided_slice %94 {offsets = [0, 32], sizes = [8, 32], strides = [1, 1]} : vector<8x96xf32> to vector<8x32xf32>
    %99 = vector.extract_strided_slice %94 {offsets = [0, 64], sizes = [8, 32], strides = [1, 1]} : vector<8x96xf32> to vector<8x32xf32>
    %100 = arith.mulf %98, %56 : vector<8x32xf32>
    %101 = arith.mulf %97, %96 : vector<8x32xf32>
    %102 = arith.addf %100, %101 : vector<8x32xf32>
    %103 = math.tanh %102 : vector<8x32xf32>
    %104 = arith.mulf %99, %103 : vector<8x32xf32>
    %105 = arith.truncf %88 : vector<8x32xf32> to vector<8x32xbf16>
    %106 = arith.truncf %104 : vector<8x32xf32> to vector<8x32xbf16>
    %c8_29 = arith.constant 8 : index
    %c0_30 = arith.constant 0 : index
    %107 = vector.load %arg10[%c8_29, %c0_30] : memref<64x64xbf16, #tpu.memory_space<vmem>>, vector<8x32xbf16>
    tpu.vector_store %arg10[%c8_29, %c0_30], %105 {strides = array<i32>} : memref<64x64xbf16, #tpu.memory_space<vmem>>, vector<8x32xbf16>,
    %c48_31 = arith.constant 48 : index
    %c32_32 = arith.constant 32 : index
    %108 = vector.load %arg10[%c48_31, %c32_32] : memref<64x64xbf16, #tpu.memory_space<vmem>>, vector<8x32xbf16>
    tpu.vector_store %arg10[%c48_31, %c32_32], %106 {strides = array<i32>} : memref<64x64xbf16, #tpu.memory_space<vmem>>, vector<8x32xbf16>,
    %109 = tpu.concatenate %105, %106 in 1 : vector<8x32xbf16>, vector<8x32xbf16> -> vector<8x64xbf16>
    %cst_33 = arith.constant dense<0.000000e+00> : vector<8x256xf32>
    %110 = tpu.matmul %109, %6, %cst_33 {dimension_numbers = #tpu.dot_dimension_numbers<[1], [0], [0], [1], [0, 0, 1, 1], [], []>} : vector<8x64xbf16>, vector<64x256xbf16>, vector<8x256xf32> -> vector<8x256xf32>
    %111 = vector.extract_strided_slice %110 {offsets = [0, 0], sizes = [8, 128], strides = [1, 1]} : vector<8x256xf32> to vector<8x128xf32>
    %c16 = arith.constant 16 : index
    %c0_34 = arith.constant 0 : index
    %112 = vector.load %arg11[%c16, %c0_34] : memref<64x256xbf16, #tpu.memory_space<vmem>>, vector<8x128xbf16>
    %113 = arith.extf %112 : vector<8x128xbf16> to vector<8x128xf32>
    %114 = arith.addf %111, %113 : vector<8x128xf32>
    %115 = vector.extract_strided_slice %110 {offsets = [0, 128], sizes = [8, 128], strides = [1, 1]} : vector<8x256xf32> to vector<8x128xf32>
    %c40 = arith.constant 40 : index
    %c128_35 = arith.constant 128 : index
    %116 = vector.load %arg11[%c40, %c128_35] : memref<64x256xbf16, #tpu.memory_space<vmem>>, vector<8x128xbf16>
    %117 = arith.extf %116 : vector<8x128xbf16> to vector<8x128xf32>
    %118 = arith.addf %115, %117 : vector<8x128xf32>
    %119 = vector.extract_strided_slice %114 {offsets = [0, 0], sizes = [8, 96], strides = [1, 1]} : vector<8x128xf32> to vector<8x96xf32>
    %120 = arith.negf %119 : vector<8x96xf32>
    %121 = math.exp %120 : vector<8x96xf32>
    %cst_36 = arith.constant 1.000000e+00 : f32
    %122 = vector.broadcast %cst_36 : f32 to vector<8x96xf32>
    %123 = arith.addf %122, %121 : vector<8x96xf32>
    %124 = arith.divf %122, %123 : vector<8x96xf32>
    %125 = vector.extract_strided_slice %114 {offsets = [0, 96], sizes = [8, 32], strides = [1, 1]} : vector<8x128xf32> to vector<8x32xf32>
    %126 = math.tanh %125 : vector<8x32xf32>
    %127 = vector.extract_strided_slice %124 {offsets = [0, 0], sizes = [8, 32], strides = [1, 1]} : vector<8x96xf32> to vector<8x32xf32>
    %128 = vector.extract_strided_slice %124 {offsets = [0, 32], sizes = [8, 32], strides = [1, 1]} : vector<8x96xf32> to vector<8x32xf32>
    %129 = vector.extract_strided_slice %124 {offsets = [0, 64], sizes = [8, 32], strides = [1, 1]} : vector<8x96xf32> to vector<8x32xf32>
    %130 = arith.mulf %128, %86 : vector<8x32xf32>
    %131 = arith.mulf %127, %126 : vector<8x32xf32>
    %132 = arith.addf %130, %131 : vector<8x32xf32>
    %133 = math.tanh %132 : vector<8x32xf32>
    %134 = arith.mulf %129, %133 : vector<8x32xf32>
    %135 = vector.extract_strided_slice %118 {offsets = [0, 0], sizes = [8, 96], strides = [1, 1]} : vector<8x128xf32> to vector<8x96xf32>
    %136 = arith.negf %135 : vector<8x96xf32>
    %137 = math.exp %136 : vector<8x96xf32>
    %cst_37 = arith.constant 1.000000e+00 : f32
    %138 = vector.broadcast %cst_37 : f32 to vector<8x96xf32>
    %139 = arith.addf %138, %137 : vector<8x96xf32>
    %140 = arith.divf %138, %139 : vector<8x96xf32>
    %141 = vector.extract_strided_slice %118 {offsets = [0, 96], sizes = [8, 32], strides = [1, 1]} : vector<8x128xf32> to vector<8x32xf32>
    %142 = math.tanh %141 : vector<8x32xf32>
    %143 = vector.extract_strided_slice %140 {offsets = [0, 0], sizes = [8, 32], strides = [1, 1]} : vector<8x96xf32> to vector<8x32xf32>
    %144 = vector.extract_strided_slice %140 {offsets = [0, 32], sizes = [8, 32], strides = [1, 1]} : vector<8x96xf32> to vector<8x32xf32>
    %145 = vector.extract_strided_slice %140 {offsets = [0, 64], sizes = [8, 32], strides = [1, 1]} : vector<8x96xf32> to vector<8x32xf32>
    %146 = arith.mulf %144, %102 : vector<8x32xf32>
    %147 = arith.mulf %143, %142 : vector<8x32xf32>
    %148 = arith.addf %146, %147 : vector<8x32xf32>
    %149 = math.tanh %148 : vector<8x32xf32>
    %150 = arith.mulf %145, %149 : vector<8x32xf32>
    %151 = arith.truncf %134 : vector<8x32xf32> to vector<8x32xbf16>
    %152 = arith.truncf %150 : vector<8x32xf32> to vector<8x32xbf16>
    %c16_38 = arith.constant 16 : index
    %c0_39 = arith.constant 0 : index
    %153 = vector.load %arg10[%c16_38, %c0_39] : memref<64x64xbf16, #tpu.memory_space<vmem>>, vector<8x32xbf16>
    tpu.vector_store %arg10[%c16_38, %c0_39], %151 {strides = array<i32>} : memref<64x64xbf16, #tpu.memory_space<vmem>>, vector<8x32xbf16>,
    %c40_40 = arith.constant 40 : index
    %c32_41 = arith.constant 32 : index
    %154 = vector.load %arg10[%c40_40, %c32_41] : memref<64x64xbf16, #tpu.memory_space<vmem>>, vector<8x32xbf16>
    tpu.vector_store %arg10[%c40_40, %c32_41], %152 {strides = array<i32>} : memref<64x64xbf16, #tpu.memory_space<vmem>>, vector<8x32xbf16>,
    %155 = tpu.concatenate %151, %152 in 1 : vector<8x32xbf16>, vector<8x32xbf16> -> vector<8x64xbf16>
    %cst_42 = arith.constant dense<0.000000e+00> : vector<8x256xf32>
    %156 = tpu.matmul %155, %6, %cst_42 {dimension_numbers = #tpu.dot_dimension_numbers<[1], [0], [0], [1], [0, 0, 1, 1], [], []>} : vector<8x64xbf16>, vector<64x256xbf16>, vector<8x256xf32> -> vector<8x256xf32>
    %157 = vector.extract_strided_slice %156 {offsets = [0, 0], sizes = [8, 128], strides = [1, 1]} : vector<8x256xf32> to vector<8x128xf32>
    %c24 = arith.constant 24 : index
    %c0_43 = arith.constant 0 : index
    %158 = vector.load %arg11[%c24, %c0_43] : memref<64x256xbf16, #tpu.memory_space<vmem>>, vector<8x128xbf16>
    %159 = arith.extf %158 : vector<8x128xbf16> to vector<8x128xf32>
    %160 = arith.addf %157, %159 : vector<8x128xf32>
    %161 = vector.extract_strided_slice %156 {offsets = [0, 128], sizes = [8, 128], strides = [1, 1]} : vector<8x256xf32> to vector<8x128xf32>
    %c32_44 = arith.constant 32 : index
    %c128_45 = arith.constant 128 : index
    %162 = vector.load %arg11[%c32_44, %c128_45] : memref<64x256xbf16, #tpu.memory_space<vmem>>, vector<8x128xbf16>
    %163 = arith.extf %162 : vector<8x128xbf16> to vector<8x128xf32>
    %164 = arith.addf %161, %163 : vector<8x128xf32>
    %165 = vector.extract_strided_slice %160 {offsets = [0, 0], sizes = [8, 96], strides = [1, 1]} : vector<8x128xf32> to vector<8x96xf32>
    %166 = arith.negf %165 : vector<8x96xf32>
    %167 = math.exp %166 : vector<8x96xf32>
    %cst_46 = arith.constant 1.000000e+00 : f32
    %168 = vector.broadcast %cst_46 : f32 to vector<8x96xf32>
    %169 = arith.addf %168, %167 : vector<8x96xf32>
    %170 = arith.divf %168, %169 : vector<8x96xf32>
    %171 = vector.extract_strided_slice %160 {offsets = [0, 96], sizes = [8, 32], strides = [1, 1]} : vector<8x128xf32> to vector<8x32xf32>
    %172 = math.tanh %171 : vector<8x32xf32>
    %173 = vector.extract_strided_slice %170 {offsets = [0, 0], sizes = [8, 32], strides = [1, 1]} : vector<8x96xf32> to vector<8x32xf32>
    %174 = vector.extract_strided_slice %170 {offsets = [0, 32], sizes = [8, 32], strides = [1, 1]} : vector<8x96xf32> to vector<8x32xf32>
    %175 = vector.extract_strided_slice %170 {offsets = [0, 64], sizes = [8, 32], strides = [1, 1]} : vector<8x96xf32> to vector<8x32xf32>
    %176 = arith.mulf %174, %132 : vector<8x32xf32>
    %177 = arith.mulf %173, %172 : vector<8x32xf32>
    %178 = arith.addf %176, %177 : vector<8x32xf32>
    %179 = math.tanh %178 : vector<8x32xf32>
    %180 = arith.mulf %175, %179 : vector<8x32xf32>
    %181 = vector.extract_strided_slice %164 {offsets = [0, 0], sizes = [8, 96], strides = [1, 1]} : vector<8x128xf32> to vector<8x96xf32>
    %182 = arith.negf %181 : vector<8x96xf32>
    %183 = math.exp %182 : vector<8x96xf32>
    %cst_47 = arith.constant 1.000000e+00 : f32
    %184 = vector.broadcast %cst_47 : f32 to vector<8x96xf32>
    %185 = arith.addf %184, %183 : vector<8x96xf32>
    %186 = arith.divf %184, %185 : vector<8x96xf32>
    %187 = vector.extract_strided_slice %164 {offsets = [0, 96], sizes = [8, 32], strides = [1, 1]} : vector<8x128xf32> to vector<8x32xf32>
    %188 = math.tanh %187 : vector<8x32xf32>
    %189 = vector.extract_strided_slice %186 {offsets = [0, 0], sizes = [8, 32], strides = [1, 1]} : vector<8x96xf32> to vector<8x32xf32>
    %190 = vector.extract_strided_slice %186 {offsets = [0, 32], sizes = [8, 32], strides = [1, 1]} : vector<8x96xf32> to vector<8x32xf32>
    %191 = vector.extract_strided_slice %186 {offsets = [0, 64], sizes = [8, 32], strides = [1, 1]} : vector<8x96xf32> to vector<8x32xf32>
    %192 = arith.mulf %190, %148 : vector<8x32xf32>
    %193 = arith.mulf %189, %188 : vector<8x32xf32>
    %194 = arith.addf %192, %193 : vector<8x32xf32>
    %195 = math.tanh %194 : vector<8x32xf32>
    %196 = arith.mulf %191, %195 : vector<8x32xf32>
    %197 = arith.truncf %180 : vector<8x32xf32> to vector<8x32xbf16>
    %198 = arith.truncf %196 : vector<8x32xf32> to vector<8x32xbf16>
    %c24_48 = arith.constant 24 : index
    %c0_49 = arith.constant 0 : index
    %199 = vector.load %arg10[%c24_48, %c0_49] : memref<64x64xbf16, #tpu.memory_space<vmem>>, vector<8x32xbf16>
    tpu.vector_store %arg10[%c24_48, %c0_49], %197 {strides = array<i32>} : memref<64x64xbf16, #tpu.memory_space<vmem>>, vector<8x32xbf16>,
    %c32_50 = arith.constant 32 : index
    %c32_51 = arith.constant 32 : index
    %200 = vector.load %arg10[%c32_50, %c32_51] : memref<64x64xbf16, #tpu.memory_space<vmem>>, vector<8x32xbf16>
    tpu.vector_store %arg10[%c32_50, %c32_51], %198 {strides = array<i32>} : memref<64x64xbf16, #tpu.memory_space<vmem>>, vector<8x32xbf16>,
    %201 = tpu.concatenate %197, %198 in 1 : vector<8x32xbf16>, vector<8x32xbf16> -> vector<8x64xbf16>
    %cst_52 = arith.constant dense<0.000000e+00> : vector<8x256xf32>
    %202 = tpu.matmul %201, %6, %cst_52 {dimension_numbers = #tpu.dot_dimension_numbers<[1], [0], [0], [1], [0, 0, 1, 1], [], []>} : vector<8x64xbf16>, vector<64x256xbf16>, vector<8x256xf32> -> vector<8x256xf32>
    %203 = vector.extract_strided_slice %202 {offsets = [0, 0], sizes = [8, 128], strides = [1, 1]} : vector<8x256xf32> to vector<8x128xf32>
    %c32_53 = arith.constant 32 : index
    %c0_54 = arith.constant 0 : index
    %204 = vector.load %arg11[%c32_53, %c0_54] : memref<64x256xbf16, #tpu.memory_space<vmem>>, vector<8x128xbf16>
    %205 = arith.extf %204 : vector<8x128xbf16> to vector<8x128xf32>
    %206 = arith.addf %203, %205 : vector<8x128xf32>
    %207 = vector.extract_strided_slice %202 {offsets = [0, 128], sizes = [8, 128], strides = [1, 1]} : vector<8x256xf32> to vector<8x128xf32>
    %c24_55 = arith.constant 24 : index
    %c128_56 = arith.constant 128 : index
    %208 = vector.load %arg11[%c24_55, %c128_56] : memref<64x256xbf16, #tpu.memory_space<vmem>>, vector<8x128xbf16>
    %209 = arith.extf %208 : vector<8x128xbf16> to vector<8x128xf32>
    %210 = arith.addf %207, %209 : vector<8x128xf32>
    %211 = vector.extract_strided_slice %206 {offsets = [0, 0], sizes = [8, 96], strides = [1, 1]} : vector<8x128xf32> to vector<8x96xf32>
    %212 = arith.negf %211 : vector<8x96xf32>
    %213 = math.exp %212 : vector<8x96xf32>
    %cst_57 = arith.constant 1.000000e+00 : f32
    %214 = vector.broadcast %cst_57 : f32 to vector<8x96xf32>
    %215 = arith.addf %214, %213 : vector<8x96xf32>
    %216 = arith.divf %214, %215 : vector<8x96xf32>
    %217 = vector.extract_strided_slice %206 {offsets = [0, 96], sizes = [8, 32], strides = [1, 1]} : vector<8x128xf32> to vector<8x32xf32>
    %218 = math.tanh %217 : vector<8x32xf32>
    %219 = vector.extract_strided_slice %216 {offsets = [0, 0], sizes = [8, 32], strides = [1, 1]} : vector<8x96xf32> to vector<8x32xf32>
    %220 = vector.extract_strided_slice %216 {offsets = [0, 32], sizes = [8, 32], strides = [1, 1]} : vector<8x96xf32> to vector<8x32xf32>
    %221 = vector.extract_strided_slice %216 {offsets = [0, 64], sizes = [8, 32], strides = [1, 1]} : vector<8x96xf32> to vector<8x32xf32>
    %222 = arith.mulf %220, %178 : vector<8x32xf32>
    %223 = arith.mulf %219, %218 : vector<8x32xf32>
    %224 = arith.addf %222, %223 : vector<8x32xf32>
    %225 = math.tanh %224 : vector<8x32xf32>
    %226 = arith.mulf %221, %225 : vector<8x32xf32>
    %227 = vector.extract_strided_slice %210 {offsets = [0, 0], sizes = [8, 96], strides = [1, 1]} : vector<8x128xf32> to vector<8x96xf32>
    %228 = arith.negf %227 : vector<8x96xf32>
    %229 = math.exp %228 : vector<8x96xf32>
    %cst_58 = arith.constant 1.000000e+00 : f32
    %230 = vector.broadcast %cst_58 : f32 to vector<8x96xf32>
    %231 = arith.addf %230, %229 : vector<8x96xf32>
    %232 = arith.divf %230, %231 : vector<8x96xf32>
    %233 = vector.extract_strided_slice %210 {offsets = [0, 96], sizes = [8, 32], strides = [1, 1]} : vector<8x128xf32> to vector<8x32xf32>
    %234 = math.tanh %233 : vector<8x32xf32>
    %235 = vector.extract_strided_slice %232 {offsets = [0, 0], sizes = [8, 32], strides = [1, 1]} : vector<8x96xf32> to vector<8x32xf32>
    %236 = vector.extract_strided_slice %232 {offsets = [0, 32], sizes = [8, 32], strides = [1, 1]} : vector<8x96xf32> to vector<8x32xf32>
    %237 = vector.extract_strided_slice %232 {offsets = [0, 64], sizes = [8, 32], strides = [1, 1]} : vector<8x96xf32> to vector<8x32xf32>
    %238 = arith.mulf %236, %194 : vector<8x32xf32>
    %239 = arith.mulf %235, %234 : vector<8x32xf32>
    %240 = arith.addf %238, %239 : vector<8x32xf32>
    %241 = math.tanh %240 : vector<8x32xf32>
    %242 = arith.mulf %237, %241 : vector<8x32xf32>
    %243 = arith.truncf %226 : vector<8x32xf32> to vector<8x32xbf16>
    %244 = arith.truncf %242 : vector<8x32xf32> to vector<8x32xbf16>
    %c32_59 = arith.constant 32 : index
    %c0_60 = arith.constant 0 : index
    %245 = vector.load %arg10[%c32_59, %c0_60] : memref<64x64xbf16, #tpu.memory_space<vmem>>, vector<8x32xbf16>
    tpu.vector_store %arg10[%c32_59, %c0_60], %243 {strides = array<i32>} : memref<64x64xbf16, #tpu.memory_space<vmem>>, vector<8x32xbf16>,
    %c24_61 = arith.constant 24 : index
    %c32_62 = arith.constant 32 : index
    %246 = vector.load %arg10[%c24_61, %c32_62] : memref<64x64xbf16, #tpu.memory_space<vmem>>, vector<8x32xbf16>
    tpu.vector_store %arg10[%c24_61, %c32_62], %244 {strides = array<i32>} : memref<64x64xbf16, #tpu.memory_space<vmem>>, vector<8x32xbf16>,
    %247 = tpu.concatenate %243, %244 in 1 : vector<8x32xbf16>, vector<8x32xbf16> -> vector<8x64xbf16>
    %cst_63 = arith.constant dense<0.000000e+00> : vector<8x256xf32>
    %248 = tpu.matmul %247, %6, %cst_63 {dimension_numbers = #tpu.dot_dimension_numbers<[1], [0], [0], [1], [0, 0, 1, 1], [], []>} : vector<8x64xbf16>, vector<64x256xbf16>, vector<8x256xf32> -> vector<8x256xf32>
    %249 = vector.extract_strided_slice %248 {offsets = [0, 0], sizes = [8, 128], strides = [1, 1]} : vector<8x256xf32> to vector<8x128xf32>
    %c40_64 = arith.constant 40 : index
    %c0_65 = arith.constant 0 : index
    %250 = vector.load %arg11[%c40_64, %c0_65] : memref<64x256xbf16, #tpu.memory_space<vmem>>, vector<8x128xbf16>
    %251 = arith.extf %250 : vector<8x128xbf16> to vector<8x128xf32>
    %252 = arith.addf %249, %251 : vector<8x128xf32>
    %253 = vector.extract_strided_slice %248 {offsets = [0, 128], sizes = [8, 128], strides = [1, 1]} : vector<8x256xf32> to vector<8x128xf32>
    %c16_66 = arith.constant 16 : index
    %c128_67 = arith.constant 128 : index
    %254 = vector.load %arg11[%c16_66, %c128_67] : memref<64x256xbf16, #tpu.memory_space<vmem>>, vector<8x128xbf16>
    %255 = arith.extf %254 : vector<8x128xbf16> to vector<8x128xf32>
    %256 = arith.addf %253, %255 : vector<8x128xf32>
    %257 = vector.extract_strided_slice %252 {offsets = [0, 0], sizes = [8, 96], strides = [1, 1]} : vector<8x128xf32> to vector<8x96xf32>
    %258 = arith.negf %257 : vector<8x96xf32>
    %259 = math.exp %258 : vector<8x96xf32>
    %cst_68 = arith.constant 1.000000e+00 : f32
    %260 = vector.broadcast %cst_68 : f32 to vector<8x96xf32>
    %261 = arith.addf %260, %259 : vector<8x96xf32>
    %262 = arith.divf %260, %261 : vector<8x96xf32>
    %263 = vector.extract_strided_slice %252 {offsets = [0, 96], sizes = [8, 32], strides = [1, 1]} : vector<8x128xf32> to vector<8x32xf32>
    %264 = math.tanh %263 : vector<8x32xf32>
    %265 = vector.extract_strided_slice %262 {offsets = [0, 0], sizes = [8, 32], strides = [1, 1]} : vector<8x96xf32> to vector<8x32xf32>
    %266 = vector.extract_strided_slice %262 {offsets = [0, 32], sizes = [8, 32], strides = [1, 1]} : vector<8x96xf32> to vector<8x32xf32>
    %267 = vector.extract_strided_slice %262 {offsets = [0, 64], sizes = [8, 32], strides = [1, 1]} : vector<8x96xf32> to vector<8x32xf32>
    %268 = arith.mulf %266, %224 : vector<8x32xf32>
    %269 = arith.mulf %265, %264 : vector<8x32xf32>
    %270 = arith.addf %268, %269 : vector<8x32xf32>
    %271 = math.tanh %270 : vector<8x32xf32>
    %272 = arith.mulf %267, %271 : vector<8x32xf32>
    %273 = vector.extract_strided_slice %256 {offsets = [0, 0], sizes = [8, 96], strides = [1, 1]} : vector<8x128xf32> to vector<8x96xf32>
    %274 = arith.negf %273 : vector<8x96xf32>
    %275 = math.exp %274 : vector<8x96xf32>
    %cst_69 = arith.constant 1.000000e+00 : f32
    %276 = vector.broadcast %cst_69 : f32 to vector<8x96xf32>
    %277 = arith.addf %276, %275 : vector<8x96xf32>
    %278 = arith.divf %276, %277 : vector<8x96xf32>
    %279 = vector.extract_strided_slice %256 {offsets = [0, 96], sizes = [8, 32], strides = [1, 1]} : vector<8x128xf32> to vector<8x32xf32>
    %280 = math.tanh %279 : vector<8x32xf32>
    %281 = vector.extract_strided_slice %278 {offsets = [0, 0], sizes = [8, 32], strides = [1, 1]} : vector<8x96xf32> to vector<8x32xf32>
    %282 = vector.extract_strided_slice %278 {offsets = [0, 32], sizes = [8, 32], strides = [1, 1]} : vector<8x96xf32> to vector<8x32xf32>
    %283 = vector.extract_strided_slice %278 {offsets = [0, 64], sizes = [8, 32], strides = [1, 1]} : vector<8x96xf32> to vector<8x32xf32>
    %284 = arith.mulf %282, %240 : vector<8x32xf32>
    %285 = arith.mulf %281, %280 : vector<8x32xf32>
    %286 = arith.addf %284, %285 : vector<8x32xf32>
    %287 = math.tanh %286 : vector<8x32xf32>
    %288 = arith.mulf %283, %287 : vector<8x32xf32>
    %289 = arith.truncf %272 : vector<8x32xf32> to vector<8x32xbf16>
    %290 = arith.truncf %288 : vector<8x32xf32> to vector<8x32xbf16>
    %c40_70 = arith.constant 40 : index
    %c0_71 = arith.constant 0 : index
    %291 = vector.load %arg10[%c40_70, %c0_71] : memref<64x64xbf16, #tpu.memory_space<vmem>>, vector<8x32xbf16>
    tpu.vector_store %arg10[%c40_70, %c0_71], %289 {strides = array<i32>} : memref<64x64xbf16, #tpu.memory_space<vmem>>, vector<8x32xbf16>,
    %c16_72 = arith.constant 16 : index
    %c32_73 = arith.constant 32 : index
    %292 = vector.load %arg10[%c16_72, %c32_73] : memref<64x64xbf16, #tpu.memory_space<vmem>>, vector<8x32xbf16>
    tpu.vector_store %arg10[%c16_72, %c32_73], %290 {strides = array<i32>} : memref<64x64xbf16, #tpu.memory_space<vmem>>, vector<8x32xbf16>,
    %293 = tpu.concatenate %289, %290 in 1 : vector<8x32xbf16>, vector<8x32xbf16> -> vector<8x64xbf16>
    %cst_74 = arith.constant dense<0.000000e+00> : vector<8x256xf32>
    %294 = tpu.matmul %293, %6, %cst_74 {dimension_numbers = #tpu.dot_dimension_numbers<[1], [0], [0], [1], [0, 0, 1, 1], [], []>} : vector<8x64xbf16>, vector<64x256xbf16>, vector<8x256xf32> -> vector<8x256xf32>
    %295 = vector.extract_strided_slice %294 {offsets = [0, 0], sizes = [8, 128], strides = [1, 1]} : vector<8x256xf32> to vector<8x128xf32>
    %c48_75 = arith.constant 48 : index
    %c0_76 = arith.constant 0 : index
    %296 = vector.load %arg11[%c48_75, %c0_76] : memref<64x256xbf16, #tpu.memory_space<vmem>>, vector<8x128xbf16>
    %297 = arith.extf %296 : vector<8x128xbf16> to vector<8x128xf32>
    %298 = arith.addf %295, %297 : vector<8x128xf32>
    %299 = vector.extract_strided_slice %294 {offsets = [0, 128], sizes = [8, 128], strides = [1, 1]} : vector<8x256xf32> to vector<8x128xf32>
    %c8_77 = arith.constant 8 : index
    %c128_78 = arith.constant 128 : index
    %300 = vector.load %arg11[%c8_77, %c128_78] : memref<64x256xbf16, #tpu.memory_space<vmem>>, vector<8x128xbf16>
    %301 = arith.extf %300 : vector<8x128xbf16> to vector<8x128xf32>
    %302 = arith.addf %299, %301 : vector<8x128xf32>
    %303 = vector.extract_strided_slice %298 {offsets = [0, 0], sizes = [8, 96], strides = [1, 1]} : vector<8x128xf32> to vector<8x96xf32>
    %304 = arith.negf %303 : vector<8x96xf32>
    %305 = math.exp %304 : vector<8x96xf32>
    %cst_79 = arith.constant 1.000000e+00 : f32
    %306 = vector.broadcast %cst_79 : f32 to vector<8x96xf32>
    %307 = arith.addf %306, %305 : vector<8x96xf32>
    %308 = arith.divf %306, %307 : vector<8x96xf32>
    %309 = vector.extract_strided_slice %298 {offsets = [0, 96], sizes = [8, 32], strides = [1, 1]} : vector<8x128xf32> to vector<8x32xf32>
    %310 = math.tanh %309 : vector<8x32xf32>
    %311 = vector.extract_strided_slice %308 {offsets = [0, 0], sizes = [8, 32], strides = [1, 1]} : vector<8x96xf32> to vector<8x32xf32>
    %312 = vector.extract_strided_slice %308 {offsets = [0, 32], sizes = [8, 32], strides = [1, 1]} : vector<8x96xf32> to vector<8x32xf32>
    %313 = vector.extract_strided_slice %308 {offsets = [0, 64], sizes = [8, 32], strides = [1, 1]} : vector<8x96xf32> to vector<8x32xf32>
    %314 = arith.mulf %312, %270 : vector<8x32xf32>
    %315 = arith.mulf %311, %310 : vector<8x32xf32>
    %316 = arith.addf %314, %315 : vector<8x32xf32>
    %317 = math.tanh %316 : vector<8x32xf32>
    %318 = arith.mulf %313, %317 : vector<8x32xf32>
    %319 = vector.extract_strided_slice %302 {offsets = [0, 0], sizes = [8, 96], strides = [1, 1]} : vector<8x128xf32> to vector<8x96xf32>
    %320 = arith.negf %319 : vector<8x96xf32>
    %321 = math.exp %320 : vector<8x96xf32>
    %cst_80 = arith.constant 1.000000e+00 : f32
    %322 = vector.broadcast %cst_80 : f32 to vector<8x96xf32>
    %323 = arith.addf %322, %321 : vector<8x96xf32>
    %324 = arith.divf %322, %323 : vector<8x96xf32>
    %325 = vector.extract_strided_slice %302 {offsets = [0, 96], sizes = [8, 32], strides = [1, 1]} : vector<8x128xf32> to vector<8x32xf32>
    %326 = math.tanh %325 : vector<8x32xf32>
    %327 = vector.extract_strided_slice %324 {offsets = [0, 0], sizes = [8, 32], strides = [1, 1]} : vector<8x96xf32> to vector<8x32xf32>
    %328 = vector.extract_strided_slice %324 {offsets = [0, 32], sizes = [8, 32], strides = [1, 1]} : vector<8x96xf32> to vector<8x32xf32>
    %329 = vector.extract_strided_slice %324 {offsets = [0, 64], sizes = [8, 32], strides = [1, 1]} : vector<8x96xf32> to vector<8x32xf32>
    %330 = arith.mulf %328, %286 : vector<8x32xf32>
    %331 = arith.mulf %327, %326 : vector<8x32xf32>
    %332 = arith.addf %330, %331 : vector<8x32xf32>
    %333 = math.tanh %332 : vector<8x32xf32>
    %334 = arith.mulf %329, %333 : vector<8x32xf32>
    %335 = arith.truncf %318 : vector<8x32xf32> to vector<8x32xbf16>
    %336 = arith.truncf %334 : vector<8x32xf32> to vector<8x32xbf16>
    %c48_81 = arith.constant 48 : index
    %c0_82 = arith.constant 0 : index
    %337 = vector.load %arg10[%c48_81, %c0_82] : memref<64x64xbf16, #tpu.memory_space<vmem>>, vector<8x32xbf16>
    tpu.vector_store %arg10[%c48_81, %c0_82], %335 {strides = array<i32>} : memref<64x64xbf16, #tpu.memory_space<vmem>>, vector<8x32xbf16>,
    %c8_83 = arith.constant 8 : index
    %c32_84 = arith.constant 32 : index
    %338 = vector.load %arg10[%c8_83, %c32_84] : memref<64x64xbf16, #tpu.memory_space<vmem>>, vector<8x32xbf16>
    tpu.vector_store %arg10[%c8_83, %c32_84], %336 {strides = array<i32>} : memref<64x64xbf16, #tpu.memory_space<vmem>>, vector<8x32xbf16>,
    %339 = tpu.concatenate %335, %336 in 1 : vector<8x32xbf16>, vector<8x32xbf16> -> vector<8x64xbf16>
    %cst_85 = arith.constant dense<0.000000e+00> : vector<8x256xf32>
    %340 = tpu.matmul %339, %6, %cst_85 {dimension_numbers = #tpu.dot_dimension_numbers<[1], [0], [0], [1], [0, 0, 1, 1], [], []>} : vector<8x64xbf16>, vector<64x256xbf16>, vector<8x256xf32> -> vector<8x256xf32>
    %341 = vector.extract_strided_slice %340 {offsets = [0, 0], sizes = [8, 128], strides = [1, 1]} : vector<8x256xf32> to vector<8x128xf32>
    %c56_86 = arith.constant 56 : index
    %c0_87 = arith.constant 0 : index
    %342 = vector.load %arg11[%c56_86, %c0_87] : memref<64x256xbf16, #tpu.memory_space<vmem>>, vector<8x128xbf16>
    %343 = arith.extf %342 : vector<8x128xbf16> to vector<8x128xf32>
    %344 = arith.addf %341, %343 : vector<8x128xf32>
    %345 = vector.extract_strided_slice %340 {offsets = [0, 128], sizes = [8, 128], strides = [1, 1]} : vector<8x256xf32> to vector<8x128xf32>
    %c0_88 = arith.constant 0 : index
    %c128_89 = arith.constant 128 : index
    %346 = vector.load %arg11[%c0_88, %c128_89] : memref<64x256xbf16, #tpu.memory_space<vmem>>, vector<8x128xbf16>
    %347 = arith.extf %346 : vector<8x128xbf16> to vector<8x128xf32>
    %348 = arith.addf %345, %347 : vector<8x128xf32>
    %349 = vector.extract_strided_slice %344 {offsets = [0, 0], sizes = [8, 96], strides = [1, 1]} : vector<8x128xf32> to vector<8x96xf32>
    %350 = arith.negf %349 : vector<8x96xf32>
    %351 = math.exp %350 : vector<8x96xf32>
    %cst_90 = arith.constant 1.000000e+00 : f32
    %352 = vector.broadcast %cst_90 : f32 to vector<8x96xf32>
    %353 = arith.addf %352, %351 : vector<8x96xf32>
    %354 = arith.divf %352, %353 : vector<8x96xf32>
    %355 = vector.extract_strided_slice %344 {offsets = [0, 96], sizes = [8, 32], strides = [1, 1]} : vector<8x128xf32> to vector<8x32xf32>
    %356 = math.tanh %355 : vector<8x32xf32>
    %357 = vector.extract_strided_slice %354 {offsets = [0, 0], sizes = [8, 32], strides = [1, 1]} : vector<8x96xf32> to vector<8x32xf32>
    %358 = vector.extract_strided_slice %354 {offsets = [0, 32], sizes = [8, 32], strides = [1, 1]} : vector<8x96xf32> to vector<8x32xf32>
    %359 = vector.extract_strided_slice %354 {offsets = [0, 64], sizes = [8, 32], strides = [1, 1]} : vector<8x96xf32> to vector<8x32xf32>
    %360 = arith.mulf %358, %316 : vector<8x32xf32>
    %361 = arith.mulf %357, %356 : vector<8x32xf32>
    %362 = arith.addf %360, %361 : vector<8x32xf32>
    %363 = math.tanh %362 : vector<8x32xf32>
    %364 = arith.mulf %359, %363 : vector<8x32xf32>
    %365 = vector.extract_strided_slice %348 {offsets = [0, 0], sizes = [8, 96], strides = [1, 1]} : vector<8x128xf32> to vector<8x96xf32>
    %366 = arith.negf %365 : vector<8x96xf32>
    %367 = math.exp %366 : vector<8x96xf32>
    %cst_91 = arith.constant 1.000000e+00 : f32
    %368 = vector.broadcast %cst_91 : f32 to vector<8x96xf32>
    %369 = arith.addf %368, %367 : vector<8x96xf32>
    %370 = arith.divf %368, %369 : vector<8x96xf32>
    %371 = vector.extract_strided_slice %348 {offsets = [0, 96], sizes = [8, 32], strides = [1, 1]} : vector<8x128xf32> to vector<8x32xf32>
    %372 = math.tanh %371 : vector<8x32xf32>
    %373 = vector.extract_strided_slice %370 {offsets = [0, 0], sizes = [8, 32], strides = [1, 1]} : vector<8x96xf32> to vector<8x32xf32>
    %374 = vector.extract_strided_slice %370 {offsets = [0, 32], sizes = [8, 32], strides = [1, 1]} : vector<8x96xf32> to vector<8x32xf32>
    %375 = vector.extract_strided_slice %370 {offsets = [0, 64], sizes = [8, 32], strides = [1, 1]} : vector<8x96xf32> to vector<8x32xf32>
    %376 = arith.mulf %374, %332 : vector<8x32xf32>
    %377 = arith.mulf %373, %372 : vector<8x32xf32>
    %378 = arith.addf %376, %377 : vector<8x32xf32>
    %379 = math.tanh %378 : vector<8x32xf32>
    %380 = arith.mulf %375, %379 : vector<8x32xf32>
    %381 = arith.truncf %364 : vector<8x32xf32> to vector<8x32xbf16>
    %382 = arith.truncf %380 : vector<8x32xf32> to vector<8x32xbf16>
    %c56_92 = arith.constant 56 : index
    %c0_93 = arith.constant 0 : index
    %383 = vector.load %arg10[%c56_92, %c0_93] : memref<64x64xbf16, #tpu.memory_space<vmem>>, vector<8x32xbf16>
    tpu.vector_store %arg10[%c56_92, %c0_93], %381 {strides = array<i32>} : memref<64x64xbf16, #tpu.memory_space<vmem>>, vector<8x32xbf16>,
    %c0_94 = arith.constant 0 : index
    %c32_95 = arith.constant 32 : index
    %384 = vector.load %arg10[%c0_94, %c32_95] : memref<64x64xbf16, #tpu.memory_space<vmem>>, vector<8x32xbf16>
    tpu.vector_store %arg10[%c0_94, %c32_95], %382 {strides = array<i32>} : memref<64x64xbf16, #tpu.memory_space<vmem>>, vector<8x32xbf16>,
    %c1_i32 = arith.constant 1 : i32
    %385 = arith.cmpi eq, %arg0, %c1_i32 : i32
    %386 = arith.extui %385 : i1 to i32
    %c0_i32_96 = arith.constant 0 : i32
    %387 = arith.cmpi ne, %386, %c0_i32_96 : i32
    scf.if %387 {
      %c0_97 = arith.constant 0 : index
      %c0_98 = arith.constant 0 : index
      %388 = vector.load %arg10[%c0_97, %c0_98] : memref<64x64xbf16, #tpu.memory_space<vmem>>, vector<64x64xbf16>
      %c0_99 = arith.constant 0 : index
      %c0_100 = arith.constant 0 : index
      %389 = vector.load %arg7[%c0_99, %c0_100] : memref<64x128xbf16, #tpu.memory_space<vmem>>, vector<64x128xbf16>
      %cst_101 = arith.constant dense<0.000000e+00> : vector<64x128xf32>
      %390 = tpu.matmul %388, %389, %cst_101 {dimension_numbers = #tpu.dot_dimension_numbers<[1], [0], [0], [1], [0, 0, 1, 1], [], []>} : vector<64x64xbf16>, vector<64x128xbf16>, vector<64x128xf32> -> vector<64x128xf32>
      %c0_102 = arith.constant 0 : index
      %c0_103 = arith.constant 0 : index
      %391 = vector.load %arg8[%c0_102, %c0_103] : memref<1x128xf32, #tpu.memory_space<vmem>>, vector<1x128xf32>
      %392 = vector.broadcast %391 : vector<1x128xf32> to vector<64x128xf32>
      %393 = arith.addf %390, %392 : vector<64x128xf32>
      %c0_104 = arith.constant 0 : index
      %c0_105 = arith.constant 0 : index
      %394 = vector.load %arg9[%c0_104, %c0_105] : memref<64x128xf32, #tpu.memory_space<vmem>>, vector<64x128xf32>
      tpu.vector_store %arg9[%c0_104, %c0_105], %393 {strides = array<i32>} : memref<64x128xf32, #tpu.memory_space<vmem>>, vector<64x128xf32>,
    } else {
    }
    return
  }
  func.func @transform_0(%arg0: i32) -> (i32, i32) {
    %c0_i32 = arith.constant 0 : i32
    %c0_i32_0 = arith.constant 0 : i32
    %c0_i32_1 = arith.constant 0 : i32
    return %c0_i32, %c0_i32_0 : i32, i32
  }
  func.func @transform_1(%arg0: i32) -> (i32, i32) {
    %c0_i32 = arith.constant 0 : i32
    %c0_i32_0 = arith.constant 0 : i32
    %c0_i32_1 = arith.constant 0 : i32
    return %c0_i32, %c0_i32_0 : i32, i32
  }
  func.func @transform_2(%arg0: i32) -> (i32, i32) {
    %c0_i32 = arith.constant 0 : i32
    %c0_i32_0 = arith.constant 0 : i32
    %c0_i32_1 = arith.constant 0 : i32
    return %c0_i32, %c0_i32_0 : i32, i32
  }
  func.func @transform_3(%arg0: i32) -> (i32, i32, i32) {
    %c0_i32 = arith.constant 0 : i32
    %c0_i32_0 = arith.constant 0 : i32
    %c0_i32_1 = arith.constant 0 : i32
    return %arg0, %c0_i32, %c0_i32_0 : i32, i32, i32
  }
  func.func @transform_4(%arg0: i32) -> (i32, i32, i32) {
    %c0_i32 = arith.constant 0 : i32
    %c0_i32_0 = arith.constant 0 : i32
    %c0_i32_1 = arith.constant 0 : i32
    return %arg0, %c0_i32, %c0_i32_0 : i32, i32, i32
  }
  func.func @transform_5(%arg0: i32) -> (i32, i32, i32) {
    %c0_i32 = arith.constant 0 : i32
    %c0_i32_0 = arith.constant 0 : i32
    %c0_i32_1 = arith.constant 0 : i32
    return %arg0, %c0_i32, %c0_i32_0 : i32, i32, i32
  }
  func.func @transform_6(%arg0: i32) -> (i32, i32) {
    %c0_i32 = arith.constant 0 : i32
    %c0_i32_0 = arith.constant 0 : i32
    %c0_i32_1 = arith.constant 0 : i32
    return %c0_i32, %c0_i32_0 : i32, i32
  }
  func.func @transform_7(%arg0: i32) -> (i32, i32) {
    %c0_i32 = arith.constant 0 : i32
    %c0_i32_0 = arith.constant 0 : i32
    %c0_i32_1 = arith.constant 0 : i32
    return %c0_i32, %c0_i32_0 : i32, i32
  }
  func.func @transform_8(%arg0: i32) -> (i32, i32) {
    %c0_i32 = arith.constant 0 : i32
    %c0_i32_0 = arith.constant 0 : i32
    %c0_i32_1 = arith.constant 0 : i32
    return %c0_i32, %c0_i32_0 : i32, i32
  }
}

</mosaic_0001>

<llo_original>
// kernel: graves_forward.1
$region0: #{graves_forward.1}
  #allocation0 [shape = 'u32[]', space=smem, size = 0x4, offset = 0x4, fixed_abs, tag = 'smem constant byte address 0x4 - core index']
  #allocation1 [shape = 'u32[72,128]{1,0:T(1,128)}', space=vmem, size = 0x9000, scoped, tag = 'internal scratch']
  #allocation2 [shape = 'bf16[64,64]{1,0:T(8,128)(2,1)}', space=vmem, size = 0x4000, scoped, tag = 'scratch operand']
  #allocation3 [shape = 'bf16[64,256]{1,0:T(8,128)(2,1)}', space=vmem, size = 0x8000, scoped, tag = 'scratch operand']
  %s0 = inlined_call_operand.vmem [shape: bf16[64,16], index: 0, kind: input, shape index: {}]
  %s1 = inlined_call_operand.vmem [shape: bf16[16,64], index: 1, kind: input, shape index: {}]
  %s2 = inlined_call_operand.vmem [shape: f32[1,64], index: 2, kind: input, shape index: {}]
  %s3 = inlined_call_operand.hbm [shape: bf16[2,64,256], index: 3, kind: input, shape index: {}]
  %s4 = inlined_call_operand.hbm [shape: bf16[2,64,256], index: 4, kind: input, shape index: {}]
  %s5 = inlined_call_operand.vmem [shape: f32[2,1,256], index: 5, kind: input, shape index: {}]
  %s6 = inlined_call_operand.vmem [shape: bf16[64,128], index: 6, kind: input, shape index: {}]
  %s7 = inlined_call_operand.vmem [shape: f32[1,128], index: 7, kind: input, shape index: {}]
  %s8 = inlined_call_operand.vmem [shape: f32[64,128], index: 8, kind: output, shape index: {}]
  %s9 = sld [smem:[#allocation0]]
  $region81: #{graves_forward.1} parent=0
    _
  %s11 = ssub.s32 1, %s9
  %s12 = scalar_select 0, %s11, %s9
  $region1: #{graves_forward.1} parent=0
    #allocation4 [shape = 'u8[65536]{0}', space=vmem, size = 0x10000, scoped, tag = 'input window, operand 3']
    #allocation5 [shape = 's32[2]{0}', space=sflag, size = 0x8, scoped, tag = 'scoped memory for graves_forward.1']
    #allocation6 [shape = 'u8[65536]{0}', space=vmem, size = 0x10000, scoped, tag = 'input window, operand 4']
    #allocation7 [shape = 's32[2]{0}', space=sflag, size = 0x8, scoped, tag = 'scoped memory for graves_forward.1']
    %13 = vsyncpa [#allocation5], 0
    %s14 = scalar_lea.sflag [#allocation5], 1
    %15 = vsyncpa %s14, 0
    %16 = vsyncpa [#allocation7], 0
    %s17 = scalar_lea.sflag [#allocation7], 1
    %18 = vsyncpa %s17, 0
    loop: start=0, step=1, limit=4
    $region2: #{graves_forward.1} parent=1 // loop_pre_header
      _
    $region3: #{graves_forward.1} parent=1 // loop_header
      %s20 = sphi 0, %s24
      %p21 = scmp.ge.s32.totalorder %s20, 4
      %s28 = sphi 0, %s28
      %s30 = sphi 0, %s28
      %s31 = sphi 0, %s30
      %s45 = sphi 0, %s31
      %s49 = sphi 0, %s49
      %s51 = sphi 0, %s49
      %s52 = sphi 0, %s51
      %s66 = sphi 0, %s52
      %s70 = sphi 0, %s70
      %s72 = sphi 0, %s70
      %s73 = sphi 0, %s72
      %s87 = sphi 0, %s73
      %s93 = sphi 0, %s95
      %s96 = sphi 0, %s93
      %s97 = sphi 0, %s96
      %s113 = sphi 0, %s97
      %s119 = sphi 0, %s121
      %s122 = sphi 0, %s119
      %s123 = sphi 0, %s122
      %s139 = sphi 0, %s123
      %s145 = sphi 0, %s147
      %s148 = sphi 0, %s145
      %s149 = sphi 0, %s148
      %s165 = sphi 0, %s149
      %s169 = sphi 0, %s169
      %s171 = sphi 0, %s169
      %s172 = sphi 0, %s171
      %s186 = sphi 0, %s172
      %s190 = sphi 0, %s190
      %s192 = sphi 0, %s190
      %s193 = sphi 0, %s192
      %s207 = sphi 0, %s193
      %s211 = sphi 0, %s211
      %s213 = sphi 0, %s211
      %s214 = sphi 0, %s213
      %s228 = sphi 0, %s214
    $region4: #{graves_forward.1} parent=1 // loop_header_branch
      %23 = sbr.rel (%p21) target = $region8
    $region5: #{graves_forward.1} parent=1 // loop_body
      %s25 = ssub.s32 %s20, 1
      %s26 = ssub.s32 %s20, 2
      %s27 = sadd.s32 %s20, 1
      %s29 = sadd.s32 %s28, 1
      %p32 = scmp.eq.s32.totalorder %s20, 1
      %p33 = scmp.ne.s32.totalorder %s28, %s30
      %p34 = scmp.eq.s32.totalorder %s20, 0
      %p35 = por %p33, %p34
      %p36 = scmp.ne.s32.totalorder %s28, %s30
      %p37 = scmp.eq.s32.totalorder %s25, 1
      %p38 = por %p36, %p37
      %p39 = scmp.ne.s32.totalorder %s30, %s31
      %p40 = scmp.eq.s32.totalorder %s25, 0
      %p41 = por %p39, %p40
      %p42 = scmp.ne.s32.totalorder %s30, %s31
      %p43 = scmp.eq.s32.totalorder %s26, 1
      %p44 = por %p42, %p43
      %p46 = scmp.ne.s32.totalorder %s31, %s45
      %p47 = scmp.eq.s32.totalorder %s26, 0
      %p48 = por %p46, %p47
      %s50 = sadd.s32 %s49, 1
      %p53 = scmp.eq.s32.totalorder %s20, 1
      %p54 = scmp.ne.s32.totalorder %s49, %s51
      %p55 = scmp.eq.s32.totalorder %s20, 0
      %p56 = por %p54, %p55
      %p57 = scmp.ne.s32.totalorder %s49, %s51
      %p58 = scmp.eq.s32.totalorder %s25, 1
      %p59 = por %p57, %p58
      %p60 = scmp.ne.s32.totalorder %s51, %s52
      %p61 = scmp.eq.s32.totalorder %s25, 0
      %p62 = por %p60, %p61
      %p63 = scmp.ne.s32.totalorder %s51, %s52
      %p64 = scmp.eq.s32.totalorder %s26, 1
      %p65 = por %p63, %p64
      %p67 = scmp.ne.s32.totalorder %s52, %s66
      %p68 = scmp.eq.s32.totalorder %s26, 0
      %p69 = por %p67, %p68
      %s71 = sadd.s32 %s70, 1
      %p74 = scmp.eq.s32.totalorder %s20, 1
      %p75 = scmp.ne.s32.totalorder %s70, %s72
      %p76 = scmp.eq.s32.totalorder %s20, 0
      %p77 = por %p75, %p76
      %p78 = scmp.ne.s32.totalorder %s70, %s72
      %p79 = scmp.eq.s32.totalorder %s25, 1
      %p80 = por %p78, %p79
      %p81 = scmp.ne.s32.totalorder %s72, %s73
      %p82 = scmp.eq.s32.totalorder %s25, 0
      %p83 = por %p81, %p82
      %p84 = scmp.ne.s32.totalorder %s72, %s73
      %p85 = scmp.eq.s32.totalorder %s26, 1
      %p86 = por %p84, %p85
      %p88 = scmp.ne.s32.totalorder %s73, %s87
      %p89 = scmp.eq.s32.totalorder %s26, 0
      %p90 = por %p88, %p89
      %s91 = ssub.s32 %s20, %s27
      %p92 = scmp.eq.s32.totalorder %s91, 0
      %s94 = sadd.s32 %s93, 1
      %s95 = scalar_select %p92, %s93, %s94
      %p98 = pneg %p92
      %p99 = scmp.eq.s32.totalorder %s20, 1
      %p100 = por %p98, %p99
      %p101 = scmp.ne.s32.totalorder %s93, %s96
      %p102 = scmp.eq.s32.totalorder %s20, 0
      %p103 = por %p101, %p102
      %p104 = scmp.ne.s32.totalorder %s93, %s96
      %p105 = scmp.eq.s32.totalorder %s25, 1
      %p106 = por %p104, %p105
      %p107 = scmp.ne.s32.totalorder %s96, %s97
      %p108 = scmp.eq.s32.totalorder %s25, 0
      %p109 = por %p107, %p108
      %p110 = scmp.ne.s32.totalorder %s96, %s97
      %p111 = scmp.eq.s32.totalorder %s26, 1
      %p112 = por %p110, %p111
      %p114 = scmp.ne.s32.totalorder %s97, %s113
      %p115 = scmp.eq.s32.totalorder %s26, 0
      %p116 = por %p114, %p115
      %s117 = ssub.s32 %s20, %s27
      %p118 = scmp.eq.s32.totalorder %s117, 0
      %s120 = sadd.s32 %s119, 1
      %s121 = scalar_select %p118, %s119, %s120
      %p124 = pneg %p118
      %p125 = scmp.eq.s32.totalorder %s20, 1
      %p126 = por %p124, %p125
      %p127 = scmp.ne.s32.totalorder %s119, %s122
      %p128 = scmp.eq.s32.totalorder %s20, 0
      %p129 = por %p127, %p128
      %p130 = scmp.ne.s32.totalorder %s119, %s122
      %p131 = scmp.eq.s32.totalorder %s25, 1
      %p132 = por %p130, %p131
      %p133 = scmp.ne.s32.totalorder %s122, %s123
      %p134 = scmp.eq.s32.totalorder %s25, 0
      %p135 = por %p133, %p134
      %p136 = scmp.ne.s32.totalorder %s122, %s123
      %p137 = scmp.eq.s32.totalorder %s26, 1
      %p138 = por %p136, %p137
      %p140 = scmp.ne.s32.totalorder %s123, %s139
      %p141 = scmp.eq.s32.totalorder %s26, 0
      %p142 = por %p140, %p141
      %s143 = ssub.s32 %s20, %s27
      %p144 = scmp.eq.s32.totalorder %s143, 0
      %s146 = sadd.s32 %s145, 1
      %s147 = scalar_select %p144, %s145, %s146
      %p150 = pneg %p144
      %p151 = scmp.eq.s32.totalorder %s20, 1
      %p152 = por %p150, %p151
      %p153 = scmp.ne.s32.totalorder %s145, %s148
      %p154 = scmp.eq.s32.totalorder %s20, 0
      %p155 = por %p153, %p154
      %p156 = scmp.ne.s32.totalorder %s145, %s148
      %p157 = scmp.eq.s32.totalorder %s25, 1
      %p158 = por %p156, %p157
      %p159 = scmp.ne.s32.totalorder %s148, %s149
      %p160 = scmp.eq.s32.totalorder %s25, 0
      %p161 = por %p159, %p160
      %p162 = scmp.ne.s32.totalorder %s148, %s149
      %p163 = scmp.eq.s32.totalorder %s26, 1
      %p164 = por %p162, %p163
      %p166 = scmp.ne.s32.totalorder %s149, %s165
      %p167 = scmp.eq.s32.totalorder %s26, 0
      %p168 = por %p166, %p167
      %s170 = sadd.s32 %s169, 1
      %p173 = scmp.eq.s32.totalorder %s20, 1
      %p174 = scmp.ne.s32.totalorder %s169, %s171
      %p175 = scmp.eq.s32.totalorder %s20, 0
      %p176 = por %p174, %p175
      %p177 = scmp.ne.s32.totalorder %s169, %s171
      %p178 = scmp.eq.s32.totalorder %s25, 1
      %p179 = por %p177, %p178
      %p180 = scmp.ne.s32.totalorder %s171, %s172
      %p181 = scmp.eq.s32.totalorder %s25, 0
      %p182 = por %p180, %p181
      %p183 = scmp.ne.s32.totalorder %s171, %s172
      %p184 = scmp.eq.s32.totalorder %s26, 1
      %p185 = por %p183, %p184
      %p187 = scmp.ne.s32.totalorder %s172, %s186
      %p188 = scmp.eq.s32.totalorder %s26, 0
      %p189 = por %p187, %p188
      %s191 = sadd.s32 %s190, 1
      %p194 = scmp.eq.s32.totalorder %s20, 1
      %p195 = scmp.ne.s32.totalorder %s190, %s192
      %p196 = scmp.eq.s32.totalorder %s20, 0
      %p197 = por %p195, %p196
      %p198 = scmp.ne.s32.totalorder %s190, %s192
      %p199 = scmp.eq.s32.totalorder %s25, 1
      %p200 = por %p198, %p199
      %p201 = scmp.ne.s32.totalorder %s192, %s193
      %p202 = scmp.eq.s32.totalorder %s25, 0
      %p203 = por %p201, %p202
      %p204 = scmp.ne.s32.totalorder %s192, %s193
      %p205 = scmp.eq.s32.totalorder %s26, 1
      %p206 = por %p204, %p205
      %p208 = scmp.ne.s32.totalorder %s193, %s207
      %p209 = scmp.eq.s32.totalorder %s26, 0
      %p210 = por %p208, %p209
      %s212 = sadd.s32 %s211, 1
      %p215 = scmp.eq.s32.totalorder %s20, 1
      %p216 = scmp.ne.s32.totalorder %s211, %s213
      %p217 = scmp.eq.s32.totalorder %s20, 0
      %p218 = por %p216, %p217
      %p219 = scmp.ne.s32.totalorder %s211, %s213
      %p220 = scmp.eq.s32.totalorder %s25, 1
      %p221 = por %p219, %p220
      %p222 = scmp.ne.s32.totalorder %s213, %s214
      %p223 = scmp.eq.s32.totalorder %s25, 0
      %p224 = por %p222, %p223
      %p225 = scmp.ne.s32.totalorder %s213, %s214
      %p226 = scmp.eq.s32.totalorder %s26, 1
      %p227 = por %p225, %p226
      %p229 = scmp.ne.s32.totalorder %s214, %s228
      %p230 = scmp.eq.s32.totalorder %s26, 0
      %p231 = por %p229, %p230
      %p232 = scmp.le.s32.totalorder 1, %s20
      %p233 = scmp.lt.s32.totalorder %s20, 3
      %p234 = pnand %p232, %p233
      %p235 = pneg %p234
      // Predicated region
      $region9: #{graves_forward.1} parent=5 // pred_check
        _
      $region10: #{graves_forward.1} parent=5 // pred_check_branch
        %237 = sbr.rel (%p234) target = $region12
      $region11: #{graves_forward.1} parent=5 // pred_region
        %s238 = ssub.s32 %s20, 1
        // Predicated region
        $region13: #{graves_forward.1} parent=11 // pred_check
          %p239 = pneg %p41
        $region14: #{graves_forward.1} parent=11 // pred_check_branch
          %241 = sbr.rel (%p239) target = $region16
        $region15: #{graves_forward.1} parent=11 // pred_region
          _
        $region16: #{graves_forward.1} parent=11 // pred_fallthru
          _
        // Predicated region
        $region17: #{graves_forward.1} parent=11 // pred_check
          %p242 = pneg %p62
        $region18: #{graves_forward.1} parent=11 // pred_check_branch
          %244 = sbr.rel (%p242) target = $region20
        $region19: #{graves_forward.1} parent=11 // pred_region
          _
        $region20: #{graves_forward.1} parent=11 // pred_fallthru
          _
        // Predicated region
        $region21: #{graves_forward.1} parent=11 // pred_check
          %p245 = pneg %p83
        $region22: #{graves_forward.1} parent=11 // pred_check_branch
          %247 = sbr.rel (%p245) target = $region24
        $region23: #{graves_forward.1} parent=11 // pred_region
          _
        $region24: #{graves_forward.1} parent=11 // pred_fallthru
          _
        // Predicated region
        $region25: #{graves_forward.1} parent=11 // pred_check
          %p248 = pneg %p182
        $region26: #{graves_forward.1} parent=11 // pred_check_branch
          %250 = sbr.rel (%p248) target = $region28
        $region27: #{graves_forward.1} parent=11 // pred_region
          _
        $region28: #{graves_forward.1} parent=11 // pred_fallthru
          _
        // Predicated region
        $region29: #{graves_forward.1} parent=11 // pred_check
          %p251 = pneg %p203
        $region30: #{graves_forward.1} parent=11 // pred_check_branch
          %253 = sbr.rel (%p251) target = $region32
        $region31: #{graves_forward.1} parent=11 // pred_region
          _
        $region32: #{graves_forward.1} parent=11 // pred_fallthru
          _
      $region12: #{graves_forward.1} parent=5 // pred_fallthru
        _
      %p254 = scmp.lt.s32.totalorder %s20, 2
      // Predicated region
      $region33: #{graves_forward.1} parent=5 // pred_check
        %p255 = pneg %p254
      $region34: #{graves_forward.1} parent=5 // pred_check_branch
        %257 = sbr.rel (%p255) target = $region36
      $region35: #{graves_forward.1} parent=5 // pred_region
        // Predicated region
        $region37: #{graves_forward.1} parent=35 // pred_check
          %p258 = pneg %p103
        $region38: #{graves_forward.1} parent=35 // pred_check_branch
          %260 = sbr.rel (%p258) target = $region40
        $region39: #{graves_forward.1} parent=35 // pred_region
          %s261 = sand.u32 %s93, 1
          %s262 = scalar_lea.sflag [#allocation5], %s261
          %s263 = sand.u32 %s93, 1
          %s264 = smul.addr %s263, 64
          %s265 = scalar_lea.vmem [#allocation4], %s264
          %267 = vsyncadd %s262, 0
          %s268 = smul.addr %s20, 16
          %s269 = smul.addr %s268, 4
          %s270 = scalar_lea.hbm %s3, %s269
          %s271 = sshll.u32 %s270, 4
          %s272 = int_to_ptr.hbm [resolvable:$true] %s271
          %s273 = sshll.u32 %s265, 4
          %s274 = int_to_ptr.vmem [resolvable:$true] %s273
          %279 = dma.hbm_to_vmem [thread:$0]  %s272, 1024, %s274, %s262, 128, 128, 8
        $region40: #{graves_forward.1} parent=35 // pred_fallthru
          _
        // Predicated region
        $region41: #{graves_forward.1} parent=35 // pred_check
          %p280 = pneg %p129
        $region42: #{graves_forward.1} parent=35 // pred_check_branch
          %282 = sbr.rel (%p280) target = $region44
        $region43: #{graves_forward.1} parent=35 // pred_region
          %s283 = sand.u32 %s119, 1
          %s284 = scalar_lea.sflag [#allocation7], %s283
          %s285 = sand.u32 %s119, 1
          %s286 = smul.addr %s285, 64
          %s287 = scalar_lea.vmem [#allocation6], %s286
          %289 = vsyncadd %s284, 0
          %s290 = smul.addr %s20, 16
          %s291 = smul.addr %s290, 4
          %s292 = scalar_lea.hbm %s4, %s291
          %s293 = sshll.u32 %s292, 4
          %s294 = int_to_ptr.hbm [resolvable:$true] %s293
          %s295 = sshll.u32 %s287, 4
          %s296 = int_to_ptr.vmem [resolvable:$true] %s295
          %301 = dma.hbm_to_vmem [thread:$0]  %s294, 1024, %s296, %s284, 128, 128, 8
        $region44: #{graves_forward.1} parent=35 // pred_fallthru
          _
        // Predicated region
        $region45: #{graves_forward.1} parent=35 // pred_check
          %p302 = pneg %p155
        $region46: #{graves_forward.1} parent=35 // pred_check_branch
          %304 = sbr.rel (%p302) target = $region48
        $region47: #{graves_forward.1} parent=35 // pred_region
          %p305 = scmp.lt.s32.totalorder %s20, 1
          %s306 = scalar_select %p305, %s20, 1
          %s307 = smul.addr %s306, 2
          %s308 = scalar_lea.vmem %s5, %s307
        $region48: #{graves_forward.1} parent=35 // pred_fallthru
          _
      $region36: #{graves_forward.1} parent=5 // pred_fallthru
        _
      %p309 = scmp.le.s32.totalorder 1, %s20
      %p310 = scmp.lt.s32.totalorder %s20, 3
      %p311 = pnand %p309, %p310
      %p312 = pneg %p311
      // Predicated region
      $region49: #{graves_forward.1} parent=5 // pred_check
        _
      $region50: #{graves_forward.1} parent=5 // pred_check_branch
        %314 = sbr.rel (%p311) target = $region52
      $region51: #{graves_forward.1} parent=5 // pred_region
        %s315 = ssub.s32 %s20, 1
        %s316 = sand.u32 %s96, 1
        %s317 = scalar_lea.sflag [#allocation5], %s316
        %s318 = sand.u32 %s96, 1
        %s319 = smul.addr %s318, 64
        %s320 = scalar_lea.vmem [#allocation4], %s319
        // Predicated region
        $region53: #{graves_forward.1} parent=51 // pred_check
          %p321 = pneg %p109
        $region54: #{graves_forward.1} parent=51 // pred_check_branch
          %323 = sbr.rel (%p321) target = $region56
        $region55: #{graves_forward.1} parent=51 // pred_region
          %325 = dma.done %s317, 1024
        $region56: #{graves_forward.1} parent=51 // pred_fallthru
          _
        %s326 = sand.u32 %s122, 1
        %s327 = scalar_lea.sflag [#allocation7], %s326
        %s328 = sand.u32 %s122, 1
        %s329 = smul.addr %s328, 64
        %s330 = scalar_lea.vmem [#allocation6], %s329
        // Predicated region
        $region57: #{graves_forward.1} parent=51 // pred_check
          %p331 = pneg %p135
        $region58: #{graves_forward.1} parent=51 // pred_check_branch
          %333 = sbr.rel (%p331) target = $region60
        $region59: #{graves_forward.1} parent=51 // pred_region
          %335 = dma.done %s327, 1024
        $region60: #{graves_forward.1} parent=51 // pred_fallthru
          _
        %p336 = pneg %p41
        %p337 = pneg %p38
        %p338 = pneg %p62
        %p339 = pneg %p59
        %p340 = pneg %p83
        %p341 = pneg %p80
        %s342 = sand.u32 %s96, 1
        %s343 = scalar_lea.sflag [#allocation5], %s342
        %s344 = sand.u32 %s96, 1
        %s345 = smul.addr %s344, 64
        %s346 = scalar_lea.vmem [#allocation4], %s345
        %p347 = pneg %p109
        %p348 = pneg %p106
        %s349 = sand.u32 %s122, 1
        %s350 = scalar_lea.sflag [#allocation7], %s349
        %s351 = sand.u32 %s122, 1
        %s352 = smul.addr %s351, 64
        %s353 = scalar_lea.vmem [#allocation6], %s352
        %p354 = pneg %p135
        %p355 = pneg %p132
        %p356 = scmp.lt.s32.totalorder %s25, 1
        %s357 = scalar_select %p356, %s25, 1
        %s358 = smul.addr %s357, 2
        %s359 = scalar_lea.vmem %s5, %s358
        %p360 = pneg %p161
        %p361 = pneg %p158
        %p362 = pneg %p182
        %p363 = pneg %p179
        %p364 = pneg %p203
        %p365 = pneg %p200
        %p366 = pneg %p224
        %p367 = pneg %p221
        %p368 = scmp.lt.s32.totalorder %s25, 1
        %s369 = scalar_select %p368, %s25, 1
        %s370 = smul.addr %s369, 2
        %s371 = scalar_lea.vmem %s5, %s370
        %p373 = scmp.eq.s32.totalorder %s25, 0
        // Predicated region
        $region61: #{graves_forward.1} parent=51 // pred_check
          %p374 = pneg %p373
        $region62: #{graves_forward.1} parent=51 // pred_check_branch
          %376 = sbr.rel (%p374) target = $region64
        $region63: #{graves_forward.1} parent=51 // pred_region
          %v377 = vld [vmem:[%s0] sm:$0xf]
          %v378 = vld [vmem:[%s0 + $0x4] sm:$0xf]
          %v379 = vld [vmem:[%s0 + $0x8] sm:$0xf]
          %v380 = vld [vmem:[%s0 + $0xc] sm:$0xf]
          %v381 = vld [vmem:[%s0 + $0x10] sm:$0xf]
          %v382 = vld [vmem:[%s0 + $0x14] sm:$0xf]
          %v383 = vld [vmem:[%s0 + $0x18] sm:$0xf]
          %v384 = vld [vmem:[%s0 + $0x1c] sm:$0xf]
          %v385 = vld [vmem:[%s1] sm:$0xf]
          %v386 = vld [vmem:[%s1 + $0x4] sm:$0xf]
          %v387 = vld [vmem:[%s2] sm:$0x1]
          %v389 = vperm.slane %v387, 0
          %v399 = vunpack.c.l.b16 %v377
          %v400 = vunpack.c.l.b16 %v378
          %v401 = vunpack.c.l.b16 %v379
          %v402 = vunpack.c.l.b16 %v380
          %v403 = vunpack.c.l.b16 %v381
          %v404 = vunpack.c.l.b16 %v382
          %v405 = vunpack.c.l.b16 %v383
          %v406 = vunpack.c.l.b16 %v384
          %v407 = vpack.c.b16 %v400, %v399
          %v408 = vpack.c.b16 %v402, %v401
          %v409 = vpack.c.b16 %v404, %v403
          %v410 = vpack.c.b16 %v406, %v405
          %v413 = vunpack.c.l.b16 %v385
          %v414 = vunpack.c.l.b16 %v386
          %v415 = vpack.c.b16 %v414, %v413
          %vm417 = vcmask 130048
          %v419 = vsel %vm417, %v407, 0
          %v422 = vsel %vm417, %v408, 0
          %v425 = vsel %vm417, %v409, 0
          %v428 = vsel %vm417, %v410, 0
          %430 = vmatpush.bf16.msra.mxu0 0
          %431 = vmatpush.bf16.msra.mxu0 0
          %432 = vmatpush.bf16.msra.mxu0 0
          %433 = vmatpush.bf16.msra.mxu0 0
          %434 = vmatpush.bf16.msra.mxu0 0
          %435 = vmatpush.bf16.msra.mxu0 0
          %436 = vmatpush.bf16.msra.mxu0 0
          %437 = vmatpush.bf16.msra.mxu0 %v415
          %438 = vmatmul.bf16.gmra.mxu0 %v419
          %v439 = vpop.f32.mrf.mxu0
          %v440 = vadd.f32 %v389, %v439
          %v441 = vpop.f32.mrf.mxu0
          %v442 = vadd.f32 %v389, %v441
          %443 = vmatmul.bf16.gmra.mxu0 %v422
          %v444 = vpop.f32.mrf.mxu0
          %v445 = vadd.f32 %v389, %v444
          %v446 = vpop.f32.mrf.mxu0
          %v447 = vadd.f32 %v389, %v446
          %448 = vmatmul.bf16.gmra.mxu0 %v425
          %v449 = vpop.f32.mrf.mxu0
          %v450 = vadd.f32 %v389, %v449
          %v451 = vpop.f32.mrf.mxu0
          %v452 = vadd.f32 %v389, %v451
          %453 = vmatmul.bf16.gmra.mxu0 %v428
          %v454 = vpop.f32.mrf.mxu0
          %v455 = vadd.f32 %v389, %v454
          %v456 = vpop.f32.mrf.mxu0
          %v457 = vadd.f32 %v389, %v456
          %458 = vdwg.mxu0
          %v459 = vpack.c.bf16 %v440, %v440
          %v460 = vpack.c.bf16 %v442, %v442
          %v461 = vpack.c.bf16 %v445, %v445
          %v462 = vpack.c.bf16 %v447, %v447
          %v463 = vpack.c.bf16 %v450, %v450
          %v464 = vpack.c.bf16 %v452, %v452
          %v465 = vpack.c.bf16 %v455, %v455
          %v466 = vpack.c.bf16 %v457, %v457
          %vm467 = vcmask 519168
          %468 = vst.msk [vmem:[#allocation2] sm:$0xf] %vm467, %v459
          %469 = vst.msk [vmem:[#allocation2 + $0x4] sm:$0xf] %vm467, %v460
          %470 = vst.msk [vmem:[#allocation2 + $0x8] sm:$0xf] %vm467, %v461
          %471 = vst.msk [vmem:[#allocation2 + $0xc] sm:$0xf] %vm467, %v462
          %472 = vst.msk [vmem:[#allocation2 + $0x10] sm:$0xf] %vm467, %v463
          %473 = vst.msk [vmem:[#allocation2 + $0x14] sm:$0xf] %vm467, %v464
          %474 = vst.msk [vmem:[#allocation2 + $0x18] sm:$0xf] %vm467, %v465
          %475 = vst.msk [vmem:[#allocation2 + $0x1c] sm:$0xf] %vm467, %v466
        $region64: #{graves_forward.1} parent=51 // pred_fallthru
          _
        %v476 = vld [vmem:[%s320] sm:$0xff]
        %v477 = vld [vmem:[%s320 + $0x8] sm:$0xff]
        %v478 = vld [vmem:[%s320 + $0x10] sm:$0xff]
        %v479 = vld [vmem:[%s320 + $0x18] sm:$0xff]
        %v480 = vld [vmem:[%s320 + $0x20] sm:$0xff]
        %v481 = vld [vmem:[%s320 + $0x28] sm:$0xff]
        %v482 = vld [vmem:[%s320 + $0x30] sm:$0xff]
        %v483 = vld [vmem:[%s320 + $0x38] sm:$0xff]
        %v484 = vld [vmem:[%s330] sm:$0xff]
        %v485 = vld [vmem:[%s330 + $0x8] sm:$0xff]
        %v486 = vld [vmem:[%s330 + $0x10] sm:$0xff]
        %v487 = vld [vmem:[%s330 + $0x18] sm:$0xff]
        %v488 = vld [vmem:[%s330 + $0x20] sm:$0xff]
        %v489 = vld [vmem:[%s330 + $0x28] sm:$0xff]
        %v490 = vld [vmem:[%s330 + $0x30] sm:$0xff]
        %v491 = vld [vmem:[%s330 + $0x38] sm:$0xff]
        %v492 = vld [vmem:[%s371] sm:$0x3]
        %v493 = vld [vmem:[#allocation2] sm:$0xf]
        %v494 = vld [vmem:[#allocation2 + $0x4] sm:$0xf]
        %v495 = vld [vmem:[#allocation2 + $0x8] sm:$0xf]
        %v496 = vld [vmem:[#allocation2 + $0xc] sm:$0xf]
        %v497 = vld [vmem:[#allocation2 + $0x10] sm:$0xf]
        %v498 = vld [vmem:[#allocation2 + $0x14] sm:$0xf]
        %v499 = vld [vmem:[#allocation2 + $0x18] sm:$0xf]
        %v500 = vld [vmem:[#allocation2 + $0x1c] sm:$0xf]
        %v502 = vperm.slane %v492, 0
        %v503 = vperm.slane %v492, 1
        %v514 = vunpack.c.l.b16 %v493
        %v515 = vunpack.c.l.b16 %v494
        %v516 = vunpack.c.l.b16 %v495
        %v517 = vunpack.c.l.b16 %v496
        %v518 = vunpack.c.l.b16 %v497
        %v519 = vunpack.c.l.b16 %v498
        %v520 = vunpack.c.l.b16 %v499
        %v521 = vunpack.c.l.b16 %v500
        %v522 = vpack.c.b16 %v515, %v514
        %v523 = vpack.c.b16 %v517, %v516
        %v524 = vpack.c.b16 %v519, %v518
        %v525 = vpack.c.b16 %v521, %v520
        %v534 = vunpack.c.l.b16 %v476
        %v535 = vunpack.c.h.b16 %v476
        %v536 = vunpack.c.l.b16 %v477
        %v537 = vunpack.c.h.b16 %v477
        %v538 = vunpack.c.l.b16 %v478
        %v539 = vunpack.c.h.b16 %v478
        %v540 = vunpack.c.l.b16 %v479
        %v541 = vunpack.c.h.b16 %v479
        %v542 = vunpack.c.l.b16 %v480
        %v543 = vunpack.c.h.b16 %v480
        %v544 = vunpack.c.l.b16 %v481
        %v545 = vunpack.c.h.b16 %v481
        %v546 = vunpack.c.l.b16 %v482
        %v547 = vunpack.c.h.b16 %v482
        %v548 = vunpack.c.l.b16 %v483
        %v549 = vunpack.c.h.b16 %v483
        %v550 = vpack.c.b16 %v536, %v534
        %v551 = vpack.c.b16 %v537, %v535
        %v552 = vpack.c.b16 %v540, %v538
        %v553 = vpack.c.b16 %v541, %v539
        %v554 = vpack.c.b16 %v544, %v542
        %v555 = vpack.c.b16 %v545, %v543
        %v556 = vpack.c.b16 %v548, %v546
        %v557 = vpack.c.b16 %v549, %v547
        %vm566 = vcmask 523264
        %v568 = vsel %vm566, %v522, 0
        %v571 = vsel %vm566, %v523, 0
        %v574 = vsel %vm566, %v524, 0
        %v577 = vsel %vm566, %v525, 0
        %579 = vmatpush.bf16.msra.mxu0 0
        %580 = vmatpush.bf16.msra.mxu0 0
        %581 = vmatpush.bf16.msra.mxu0 0
        %582 = vmatpush.bf16.msra.mxu0 0
        %583 = vmatpush.bf16.msra.mxu0 %v556
        %584 = vmatpush.bf16.msra.mxu0 %v554
        %585 = vmatpush.bf16.msra.mxu0 %v552
        %586 = vmatpush.bf16.msra.mxu0 %v550
        %587 = vmatmul.bf16.gmra.mxu0 %v568
        %v588 = vpop.f32.mrf.mxu0
        %v589 = vadd.f32 %v502, %v588
        %v590 = vpop.f32.mrf.mxu0
        %v591 = vadd.f32 %v502, %v590
        %592 = vmatmul.bf16.gmra.mxu0 %v571
        %v593 = vpop.f32.mrf.mxu0
        %v594 = vadd.f32 %v502, %v593
        %v595 = vpop.f32.mrf.mxu0
        %v596 = vadd.f32 %v502, %v595
        %597 = vmatmul.bf16.gmra.mxu0 %v574
        %v598 = vpop.f32.mrf.mxu0
        %v599 = vadd.f32 %v502, %v598
        %v600 = vpop.f32.mrf.mxu0
        %v601 = vadd.f32 %v502, %v600
        %602 = vmatmul.bf16.gmra.mxu0 %v577
        %v603 = vpop.f32.mrf.mxu0
        %v604 = vadd.f32 %v502, %v603
        %v605 = vpop.f32.mrf.mxu0
        %v606 = vadd.f32 %v502, %v605
        %607 = vdwg.mxu0
        %608 = vmatpush.bf16.msra.mxu0 0
        %609 = vmatpush.bf16.msra.mxu0 0
        %610 = vmatpush.bf16.msra.mxu0 0
        %611 = vmatpush.bf16.msra.mxu0 0
        %612 = vmatpush.bf16.msra.mxu0 %v557
        %613 = vmatpush.bf16.msra.mxu0 %v555
        %614 = vmatpush.bf16.msra.mxu0 %v553
        %615 = vmatpush.bf16.msra.mxu0 %v551
        %616 = vmatmul.bf16.gmra.mxu0 %v568
        %v617 = vpop.f32.mrf.mxu0
        %v618 = vadd.f32 %v503, %v617
        %v619 = vpop.f32.mrf.mxu0
        %v620 = vadd.f32 %v503, %v619
        %621 = vmatmul.bf16.gmra.mxu0 %v571
        %v622 = vpop.f32.mrf.mxu0
        %v623 = vadd.f32 %v503, %v622
        %v624 = vpop.f32.mrf.mxu0
        %v625 = vadd.f32 %v503, %v624
        %626 = vmatmul.bf16.gmra.mxu0 %v574
        %v627 = vpop.f32.mrf.mxu0
        %v628 = vadd.f32 %v503, %v627
        %v629 = vpop.f32.mrf.mxu0
        %v630 = vadd.f32 %v503, %v629
        %631 = vmatmul.bf16.gmra.mxu0 %v577
        %v632 = vpop.f32.mrf.mxu0
        %v633 = vadd.f32 %v503, %v632
        %v634 = vpop.f32.mrf.mxu0
        %v635 = vadd.f32 %v503, %v634
        %636 = vdwg.mxu0
        %v637 = vpack.c.bf16 %v618, %v589
        %v638 = vpack.c.bf16 %v620, %v591
        %v639 = vpack.c.bf16 %v623, %v594
        %v640 = vpack.c.bf16 %v625, %v596
        %v641 = vpack.c.bf16 %v628, %v599
        %v642 = vpack.c.bf16 %v630, %v601
        %v643 = vpack.c.bf16 %v633, %v604
        %v644 = vpack.c.bf16 %v635, %v606
        %645 = vst [vmem:[#allocation3] sm:$0xff] %v637
        %646 = vst [vmem:[#allocation3 + $0x8] sm:$0xff] %v638
        %647 = vst [vmem:[#allocation3 + $0x10] sm:$0xff] %v639
        %648 = vst [vmem:[#allocation3 + $0x18] sm:$0xff] %v640
        %649 = vst [vmem:[#allocation3 + $0x20] sm:$0xff] %v641
        %650 = vst [vmem:[#allocation3 + $0x28] sm:$0xff] %v642
        %651 = vst [vmem:[#allocation3 + $0x30] sm:$0xff] %v643
        %652 = vst [vmem:[#allocation3 + $0x38] sm:$0xff] %v644
        %v661 = vunpack.c.l.b16 %v484
        %v662 = vunpack.c.h.b16 %v484
        %v663 = vunpack.c.l.b16 %v485
        %v664 = vunpack.c.h.b16 %v485
        %v665 = vunpack.c.l.b16 %v486
        %v666 = vunpack.c.h.b16 %v486
        %v667 = vunpack.c.l.b16 %v487
        %v668 = vunpack.c.h.b16 %v487
        %v669 = vunpack.c.l.b16 %v488
        %v670 = vunpack.c.h.b16 %v488
        %v671 = vunpack.c.l.b16 %v489
        %v672 = vunpack.c.h.b16 %v489
        %v673 = vunpack.c.l.b16 %v490
        %v674 = vunpack.c.h.b16 %v490
        %v675 = vunpack.c.l.b16 %v491
        %v676 = vunpack.c.h.b16 %v491
        %v677 = vpack.c.b16 %v663, %v661
        %v678 = vpack.c.b16 %v664, %v662
        %v679 = vpack.c.b16 %v667, %v665
        %v680 = vpack.c.b16 %v668, %v666
        %v681 = vpack.c.b16 %v671, %v669
        %v682 = vpack.c.b16 %v672, %v670
        %v683 = vpack.c.b16 %v675, %v673
        %v684 = vpack.c.b16 %v676, %v674
        %v694 = vsel %vm566, 0, 0
        %696 = vmatpush.bf16.msra.mxu0 0
        %697 = vmatpush.bf16.msra.mxu0 0
        %698 = vmatpush.bf16.msra.mxu0 0
        %699 = vmatpush.bf16.msra.mxu0 0
        %700 = vmatpush.bf16.msra.mxu0 %v683
        %701 = vmatpush.bf16.msra.mxu0 %v681
        %702 = vmatpush.bf16.msra.mxu0 %v679
        %703 = vmatpush.bf16.msra.mxu0 %v677
        %704 = vmatmul.bf16.gmra.mxu0 %v694
        %v705 = vpop.f32.mrf.mxu0
        %v706 = vadd.f32 0.0, %v705
        %v707 = vpop.f32.mrf.mxu0
        %708 = vdwg.mxu0
        %709 = vmatpush.bf16.msra.mxu0 0
        %710 = vmatpush.bf16.msra.mxu0 0
        %711 = vmatpush.bf16.msra.mxu0 0
        %712 = vmatpush.bf16.msra.mxu0 0
        %713 = vmatpush.bf16.msra.mxu0 %v684
        %714 = vmatpush.bf16.msra.mxu0 %v682
        %715 = vmatpush.bf16.msra.mxu0 %v680
        %716 = vmatpush.bf16.msra.mxu0 %v678
        %717 = vmatmul.bf16.gmra.mxu0 %v694
        %v718 = vpop.f32.mrf.mxu0
        %v719 = vadd.f32 0.0, %v718
        %v720 = vpop.f32.mrf.mxu0
        %721 = vdwg.mxu0
        %v722 = vld [vmem:[#allocation3] sm:$0xf]
        %v723 = vunpack.c.l.bf16 %v722
        %v724 = vadd.f32 %v706, %v723
        %v725 = vld [vmem:[#allocation3 + $0x3c] sm:$0xf]
        %v726 = vunpack.c.l.bf16 %v725
        %v727 = vadd.f32 %v719, %v726
        %v728 = vxor.u32 %v724, 2147483648
        %v729 = vmul.f32 %v728, 1.442695
        %v730 = vpow.pop %v729
        %v731 = vadd.f32 %v730, 1.0
        %v732 = vrcp.pop %v731
        %v733 = vmul.f32 %v731, %v732
        %v734 = vsub.f32 1.0, %v733
        %v735 = vmul.f32 %v732, %v734
        %v736 = vadd.f32 %v732, %v735
        %vm737 = vweird.f32 %v731
        %vm738 = vweird.f32 %v732
        %vm739 = vmor %vm737, %vm738
        %v740 = vsel %vm739, %v732, %v736
        %v741 = vand.u32 2147483647, %v731
        %vm742 = vcmp.eq.f32.partialorder %v741, 8.507059e+37
        %v743 = vand.u32 %v731, 2147483648
        %v744 = vor.u32 1.1754944e-38, %v743
        %v745 = vsel %vm742, %v744, %v740
        %v746 = vmul.f32 1.0, %v745
        %v747 = vtanh.pop %v724
        %v748 = vmul.f32 %v746, 0.0
        %750 = vrot.lane.b32.xlu0 %v747, 32
        %v751 = vpop.permute.xlu0 %750
        %v753 = vmul.f32 %v746, %v751
        %755 = vrot.lane.b32.xlu0 %v753, 32
        %v756 = vpop.permute.xlu0 %755
        %v758 = vadd.f32 %v748, %v756
        %v759 = vtanh.pop %v758
        %761 = vrot.lane.b32.xlu0 %v759, 32
        %v762 = vpop.permute.xlu0 %761
        %v764 = vmul.f32 %v746, %v762
        %v765 = vxor.u32 %v727, 2147483648
        %v766 = vmul.f32 %v765, 1.442695
        %v767 = vpow.pop %v766
        %v768 = vadd.f32 %v767, 1.0
        %v769 = vrcp.pop %v768
        %v770 = vmul.f32 %v768, %v769
        %v771 = vsub.f32 1.0, %v770
        %v772 = vmul.f32 %v769, %v771
        %v773 = vadd.f32 %v769, %v772
        %vm774 = vweird.f32 %v768
        %vm775 = vweird.f32 %v769
        %vm776 = vmor %vm774, %vm775
        %v777 = vsel %vm776, %v769, %v773
        %v778 = vand.u32 2147483647, %v768
        %vm779 = vcmp.eq.f32.partialorder %v778, 8.507059e+37
        %v780 = vand.u32 %v768, 2147483648
        %v781 = vor.u32 1.1754944e-38, %v780
        %v782 = vsel %vm779, %v781, %v777
        %v783 = vmul.f32 1.0, %v782
        %v784 = vtanh.pop %v727
        %v785 = vmul.f32 %v783, 0.0
        %787 = vrot.lane.b32.xlu0 %v784, 32
        %v788 = vpop.permute.xlu0 %787
        %v790 = vmul.f32 %v783, %v788
        %792 = vrot.lane.b32.xlu0 %v790, 32
        %v793 = vpop.permute.xlu0 %792
        %v795 = vadd.f32 %v785, %v793
        %v796 = vtanh.pop %v795
        %798 = vrot.lane.b32.xlu0 %v796, 32
        %v799 = vpop.permute.xlu0 %798
        %v801 = vmul.f32 %v783, %v799
        %v802 = vpack.c.bf16 %v764, %v764
        %v803 = vpack.c.bf16 %v801, %v801
        %805 = vrot.lane.b32.xlu0 %v802, 64
        %v806 = vpop.permute.xlu0 %805
        %vm808 = vcmask 257024
        %809 = vst.msk [vmem:[#allocation2] sm:$0xf] %vm808, %v806
        %811 = vrot.lane.b32.xlu0 %v803, 96
        %v812 = vpop.permute.xlu0 %811
        %vm814 = vcmask 519424
        %815 = vst.msk [vmem:[#allocation2 + $0x1c] sm:$0xf] %vm814, %v812
        %v816 = vunpack.c.l.b16 %v802
        %v817 = vpack.c.b16 %v816, %v816
        %818 = vrot.lane.b32.xlu0 %v817, 64
        %v819 = vpop.permute.xlu0 %818
        %v820 = vunpack.c.l.b16 %v803
        %v821 = vpack.c.b16 %v820, %v820
        %822 = vrot.lane.b32.xlu0 %v821, 96
        %v823 = vpop.permute.xlu0 %822
        %vm824 = vcmask 261120
        %v827 = vsel %vm824, %v819, %v823
        %v828 = vsel %vm566, %v827, 0
        %830 = vmatpush.bf16.msra.mxu0 0
        %831 = vmatpush.bf16.msra.mxu0 0
        %832 = vmatpush.bf16.msra.mxu0 0
        %833 = vmatpush.bf16.msra.mxu0 0
        %834 = vmatpush.bf16.msra.mxu0 %v683
        %835 = vmatpush.bf16.msra.mxu0 %v681
        %836 = vmatpush.bf16.msra.mxu0 %v679
        %837 = vmatpush.bf16.msra.mxu0 %v677
        %838 = vmatmul.bf16.gmra.mxu0 %v828
        %v839 = vpop.f32.mrf.mxu0
        %v840 = vadd.f32 0.0, %v839
        %v841 = vpop.f32.mrf.mxu0
        %842 = vdwg.mxu0
        %843 = vmatpush.bf16.msra.mxu0 0
        %844 = vmatpush.bf16.msra.mxu0 0
        %845 = vmatpush.bf16.msra.mxu0 0
        %846 = vmatpush.bf16.msra.mxu0 0
        %847 = vmatpush.bf16.msra.mxu0 %v684
        %848 = vmatpush.bf16.msra.mxu0 %v682
        %849 = vmatpush.bf16.msra.mxu0 %v680
        %850 = vmatpush.bf16.msra.mxu0 %v678
        %851 = vmatmul.bf16.gmra.mxu0 %v828
        %v852 = vpop.f32.mrf.mxu0
        %v853 = vadd.f32 0.0, %v852
        %v854 = vpop.f32.mrf.mxu0
        %855 = vdwg.mxu0
        %v856 = vld [vmem:[#allocation3 + $0x8] sm:$0xf]
        %v857 = vunpack.c.l.bf16 %v856
        %v858 = vadd.f32 %v840, %v857
        %v859 = vld [vmem:[#allocation3 + $0x34] sm:$0xf]
        %v860 = vunpack.c.l.bf16 %v859
        %v861 = vadd.f32 %v853, %v860
        %v862 = vxor.u32 %v858, 2147483648
        %v863 = vmul.f32 %v862, 1.442695
        %v864 = vpow.pop %v863
        %v865 = vadd.f32 %v864, 1.0
        %v866 = vrcp.pop %v865
        %v867 = vmul.f32 %v865, %v866
        %v868 = vsub.f32 1.0, %v867
        %v869 = vmul.f32 %v866, %v868
        %v870 = vadd.f32 %v866, %v869
        %vm871 = vweird.f32 %v865
        %vm872 = vweird.f32 %v866
        %vm873 = vmor %vm871, %vm872
        %v874 = vsel %vm873, %v866, %v870
        %v875 = vand.u32 2147483647, %v865
        %vm876 = vcmp.eq.f32.partialorder %v875, 8.507059e+37
        %v877 = vand.u32 %v865, 2147483648
        %v878 = vor.u32 1.1754944e-38, %v877
        %v879 = vsel %vm876, %v878, %v874
        %v880 = vmul.f32 1.0, %v879
        %v881 = vtanh.pop %v858
        %v882 = vmul.f32 %v880, %v758
        %884 = vrot.lane.b32.xlu0 %v881, 32
        %v885 = vpop.permute.xlu0 %884
        %v887 = vmul.f32 %v880, %v885
        %889 = vrot.lane.b32.xlu0 %v887, 32
        %v890 = vpop.permute.xlu0 %889
        %v892 = vadd.f32 %v882, %v890
        %v893 = vtanh.pop %v892
        %895 = vrot.lane.b32.xlu0 %v893, 32
        %v896 = vpop.permute.xlu0 %895
        %v898 = vmul.f32 %v880, %v896
        %v899 = vxor.u32 %v861, 2147483648
        %v900 = vmul.f32 %v899, 1.442695
        %v901 = vpow.pop %v900
        %v902 = vadd.f32 %v901, 1.0
        %v903 = vrcp.pop %v902
        %v904 = vmul.f32 %v902, %v903
        %v905 = vsub.f32 1.0, %v904
        %v906 = vmul.f32 %v903, %v905
        %v907 = vadd.f32 %v903, %v906
        %vm908 = vweird.f32 %v902
        %vm909 = vweird.f32 %v903
        %vm910 = vmor %vm908, %vm909
        %v911 = vsel %vm910, %v903, %v907
        %v912 = vand.u32 2147483647, %v902
        %vm913 = vcmp.eq.f32.partialorder %v912, 8.507059e+37
        %v914 = vand.u32 %v902, 2147483648
        %v915 = vor.u32 1.1754944e-38, %v914
        %v916 = vsel %vm913, %v915, %v911
        %v917 = vmul.f32 1.0, %v916
        %v918 = vtanh.pop %v861
        %v919 = vmul.f32 %v917, %v795
        %921 = vrot.lane.b32.xlu0 %v918, 32
        %v922 = vpop.permute.xlu0 %921
        %v924 = vmul.f32 %v917, %v922
        %926 = vrot.lane.b32.xlu0 %v924, 32
        %v927 = vpop.permute.xlu0 %926
        %v929 = vadd.f32 %v919, %v927
        %v930 = vtanh.pop %v929
        %932 = vrot.lane.b32.xlu0 %v930, 32
        %v933 = vpop.permute.xlu0 %932
        %v935 = vmul.f32 %v917, %v933
        %v936 = vpack.c.bf16 %v898, %v898
        %v937 = vpack.c.bf16 %v935, %v935
        %939 = vrot.lane.b32.xlu0 %v936, 64
        %v940 = vpop.permute.xlu0 %939
        %942 = vst.msk [vmem:[#allocation2 + $0x4] sm:$0xf] %vm808, %v940
        %944 = vrot.lane.b32.xlu0 %v937, 96
        %v945 = vpop.permute.xlu0 %944
        %947 = vst.msk [vmem:[#allocation2 + $0x18] sm:$0xf] %vm814, %v945
        %v948 = vunpack.c.l.b16 %v936
        %v949 = vpack.c.b16 %v948, %v948
        %950 = vrot.lane.b32.xlu0 %v949, 64
        %v951 = vpop.permute.xlu0 %950
        %v952 = vunpack.c.l.b16 %v937
        %v953 = vpack.c.b16 %v952, %v952
        %954 = vrot.lane.b32.xlu0 %v953, 96
        %v955 = vpop.permute.xlu0 %954
        %v958 = vsel %vm824, %v951, %v955
        %v959 = vsel %vm566, %v958, 0
        %961 = vmatpush.bf16.msra.mxu0 0
        %962 = vmatpush.bf16.msra.mxu0 0
        %963 = vmatpush.bf16.msra.mxu0 0
        %964 = vmatpush.bf16.msra.mxu0 0
        %965 = vmatpush.bf16.msra.mxu0 %v683
        %966 = vmatpush.bf16.msra.mxu0 %v681
        %967 = vmatpush.bf16.msra.mxu0 %v679
        %968 = vmatpush.bf16.msra.mxu0 %v677
        %969 = vmatmul.bf16.gmra.mxu0 %v959
        %v970 = vpop.f32.mrf.mxu0
        %v971 = vadd.f32 0.0, %v970
        %v972 = vpop.f32.mrf.mxu0
        %973 = vdwg.mxu0
        %974 = vmatpush.bf16.msra.mxu0 0
        %975 = vmatpush.bf16.msra.mxu0 0
        %976 = vmatpush.bf16.msra.mxu0 0
        %977 = vmatpush.bf16.msra.mxu0 0
        %978 = vmatpush.bf16.msra.mxu0 %v684
        %979 = vmatpush.bf16.msra.mxu0 %v682
        %980 = vmatpush.bf16.msra.mxu0 %v680
        %981 = vmatpush.bf16.msra.mxu0 %v678
        %982 = vmatmul.bf16.gmra.mxu0 %v959
        %v983 = vpop.f32.mrf.mxu0
        %v984 = vadd.f32 0.0, %v983
        %v985 = vpop.f32.mrf.mxu0
        %986 = vdwg.mxu0
        %v987 = vld [vmem:[#allocation3 + $0x10] sm:$0xf]
        %v988 = vunpack.c.l.bf16 %v987
        %v989 = vadd.f32 %v971, %v988
        %v990 = vld [vmem:[#allocation3 + $0x2c] sm:$0xf]
        %v991 = vunpack.c.l.bf16 %v990
        %v992 = vadd.f32 %v984, %v991
        %v993 = vxor.u32 %v989, 2147483648
        %v994 = vmul.f32 %v993, 1.442695
        %v995 = vpow.pop %v994
        %v996 = vadd.f32 %v995, 1.0
        %v997 = vrcp.pop %v996
        %v998 = vmul.f32 %v996, %v997
        %v999 = vsub.f32 1.0, %v998
        %v1000 = vmul.f32 %v997, %v999
        %v1001 = vadd.f32 %v997, %v1000
        %vm1002 = vweird.f32 %v996
        %vm1003 = vweird.f32 %v997
        %vm1004 = vmor %vm1002, %vm1003
        %v1005 = vsel %vm1004, %v997, %v1001
        %v1006 = vand.u32 2147483647, %v996
        %vm1007 = vcmp.eq.f32.partialorder %v1006, 8.507059e+37
        %v1008 = vand.u32 %v996, 2147483648
        %v1009 = vor.u32 1.1754944e-38, %v1008
        %v1010 = vsel %vm1007, %v1009, %v1005
        %v1011 = vmul.f32 1.0, %v1010
        %v1012 = vtanh.pop %v989
        %v1013 = vmul.f32 %v1011, %v892
        %1015 = vrot.lane.b32.xlu0 %v1012, 32
        %v1016 = vpop.permute.xlu0 %1015
        %v1018 = vmul.f32 %v1011, %v1016
        %1020 = vrot.lane.b32.xlu0 %v1018, 32
        %v1021 = vpop.permute.xlu0 %1020
        %v1023 = vadd.f32 %v1013, %v1021
        %v1024 = vtanh.pop %v1023
        %1026 = vrot.lane.b32.xlu0 %v1024, 32
        %v1027 = vpop.permute.xlu0 %1026
        %v1029 = vmul.f32 %v1011, %v1027
        %v1030 = vxor.u32 %v992, 2147483648
        %v1031 = vmul.f32 %v1030, 1.442695
        %v1032 = vpow.pop %v1031
        %v1033 = vadd.f32 %v1032, 1.0
        %v1034 = vrcp.pop %v1033
        %v1035 = vmul.f32 %v1033, %v1034
        %v1036 = vsub.f32 1.0, %v1035
        %v1037 = vmul.f32 %v1034, %v1036
        %v1038 = vadd.f32 %v1034, %v1037
        %vm1039 = vweird.f32 %v1033
        %vm1040 = vweird.f32 %v1034
        %vm1041 = vmor %vm1039, %vm1040
        %v1042 = vsel %vm1041, %v1034, %v1038
        %v1043 = vand.u32 2147483647, %v1033
        %vm1044 = vcmp.eq.f32.partialorder %v1043, 8.507059e+37
        %v1045 = vand.u32 %v1033, 2147483648
        %v1046 = vor.u32 1.1754944e-38, %v1045
        %v1047 = vsel %vm1044, %v1046, %v1042
        %v1048 = vmul.f32 1.0, %v1047
        %v1049 = vtanh.pop %v992
        %v1050 = vmul.f32 %v1048, %v929
        %1052 = vrot.lane.b32.xlu0 %v1049, 32
        %v1053 = vpop.permute.xlu0 %1052
        %v1055 = vmul.f32 %v1048, %v1053
        %1057 = vrot.lane.b32.xlu0 %v1055, 32
        %v1058 = vpop.permute.xlu0 %1057
        %v1060 = vadd.f32 %v1050, %v1058
        %v1061 = vtanh.pop %v1060
        %1063 = vrot.lane.b32.xlu0 %v1061, 32
        %v1064 = vpop.permute.xlu0 %1063
        %v1066 = vmul.f32 %v1048, %v1064
        %v1067 = vpack.c.bf16 %v1029, %v1029
        %v1068 = vpack.c.bf16 %v1066, %v1066
        %1070 = vrot.lane.b32.xlu0 %v1067, 64
        %v1071 = vpop.permute.xlu0 %1070
        %1073 = vst.msk [vmem:[#allocation2 + $0x8] sm:$0xf] %vm808, %v1071
        %1075 = vrot.lane.b32.xlu0 %v1068, 96
        %v1076 = vpop.permute.xlu0 %1075
        %1078 = vst.msk [vmem:[#allocation2 + $0x14] sm:$0xf] %vm814, %v1076
        %v1079 = vunpack.c.l.b16 %v1067
        %v1080 = vpack.c.b16 %v1079, %v1079
        %1081 = vrot.lane.b32.xlu0 %v1080, 64
        %v1082 = vpop.permute.xlu0 %1081
        %v1083 = vunpack.c.l.b16 %v1068
        %v1084 = vpack.c.b16 %v1083, %v1083
        %1085 = vrot.lane.b32.xlu0 %v1084, 96
        %v1086 = vpop.permute.xlu0 %1085
        %v1089 = vsel %vm824, %v1082, %v1086
        %v1090 = vsel %vm566, %v1089, 0
        %1092 = vmatpush.bf16.msra.mxu0 0
        %1093 = vmatpush.bf16.msra.mxu0 0
        %1094 = vmatpush.bf16.msra.mxu0 0
        %1095 = vmatpush.bf16.msra.mxu0 0
        %1096 = vmatpush.bf16.msra.mxu0 %v683
        %1097 = vmatpush.bf16.msra.mxu0 %v681
        %1098 = vmatpush.bf16.msra.mxu0 %v679
        %1099 = vmatpush.bf16.msra.mxu0 %v677
        %1100 = vmatmul.bf16.gmra.mxu0 %v1090
        %v1101 = vpop.f32.mrf.mxu0
        %v1102 = vadd.f32 0.0, %v1101
        %v1103 = vpop.f32.mrf.mxu0
        %1104 = vdwg.mxu0
        %1105 = vmatpush.bf16.msra.mxu0 0
        %1106 = vmatpush.bf16.msra.mxu0 0
        %1107 = vmatpush.bf16.msra.mxu0 0
        %1108 = vmatpush.bf16.msra.mxu0 0
        %1109 = vmatpush.bf16.msra.mxu0 %v684
        %1110 = vmatpush.bf16.msra.mxu0 %v682
        %1111 = vmatpush.bf16.msra.mxu0 %v680
        %1112 = vmatpush.bf16.msra.mxu0 %v678
        %1113 = vmatmul.bf16.gmra.mxu0 %v1090
        %v1114 = vpop.f32.mrf.mxu0
        %v1115 = vadd.f32 0.0, %v1114
        %v1116 = vpop.f32.mrf.mxu0
        %1117 = vdwg.mxu0
        %v1118 = vld [vmem:[#allocation3 + $0x18] sm:$0xf]
        %v1119 = vunpack.c.l.bf16 %v1118
        %v1120 = vadd.f32 %v1102, %v1119
        %v1121 = vld [vmem:[#allocation3 + $0x24] sm:$0xf]
        %v1122 = vunpack.c.l.bf16 %v1121
        %v1123 = vadd.f32 %v1115, %v1122
        %v1124 = vxor.u32 %v1120, 2147483648
        %v1125 = vmul.f32 %v1124, 1.442695
        %v1126 = vpow.pop %v1125
        %v1127 = vadd.f32 %v1126, 1.0
        %v1128 = vrcp.pop %v1127
        %v1129 = vmul.f32 %v1127, %v1128
        %v1130 = vsub.f32 1.0, %v1129
        %v1131 = vmul.f32 %v1128, %v1130
        %v1132 = vadd.f32 %v1128, %v1131
        %vm1133 = vweird.f32 %v1127
        %vm1134 = vweird.f32 %v1128
        %vm1135 = vmor %vm1133, %vm1134
        %v1136 = vsel %vm1135, %v1128, %v1132
        %v1137 = vand.u32 2147483647, %v1127
        %vm1138 = vcmp.eq.f32.partialorder %v1137, 8.507059e+37
        %v1139 = vand.u32 %v1127, 2147483648
        %v1140 = vor.u32 1.1754944e-38, %v1139
        %v1141 = vsel %vm1138, %v1140, %v1136
        %v1142 = vmul.f32 1.0, %v1141
        %v1143 = vtanh.pop %v1120
        %v1144 = vmul.f32 %v1142, %v1023
        %1146 = vrot.lane.b32.xlu0 %v1143, 32
        %v1147 = vpop.permute.xlu0 %1146
        %v1149 = vmul.f32 %v1142, %v1147
        %1151 = vrot.lane.b32.xlu0 %v1149, 32
        %v1152 = vpop.permute.xlu0 %1151
        %v1154 = vadd.f32 %v1144, %v1152
        %v1155 = vtanh.pop %v1154
        %1157 = vrot.lane.b32.xlu0 %v1155, 32
        %v1158 = vpop.permute.xlu0 %1157
        %v1160 = vmul.f32 %v1142, %v1158
        %v1161 = vxor.u32 %v1123, 2147483648
        %v1162 = vmul.f32 %v1161, 1.442695
        %v1163 = vpow.pop %v1162
        %v1164 = vadd.f32 %v1163, 1.0
        %v1165 = vrcp.pop %v1164
        %v1166 = vmul.f32 %v1164, %v1165
        %v1167 = vsub.f32 1.0, %v1166
        %v1168 = vmul.f32 %v1165, %v1167
        %v1169 = vadd.f32 %v1165, %v1168
        %vm1170 = vweird.f32 %v1164
        %vm1171 = vweird.f32 %v1165
        %vm1172 = vmor %vm1170, %vm1171
        %v1173 = vsel %vm1172, %v1165, %v1169
        %v1174 = vand.u32 2147483647, %v1164
        %vm1175 = vcmp.eq.f32.partialorder %v1174, 8.507059e+37
        %v1176 = vand.u32 %v1164, 2147483648
        %v1177 = vor.u32 1.1754944e-38, %v1176
        %v1178 = vsel %vm1175, %v1177, %v1173
        %v1179 = vmul.f32 1.0, %v1178
        %v1180 = vtanh.pop %v1123
        %v1181 = vmul.f32 %v1179, %v1060
        %1183 = vrot.lane.b32.xlu0 %v1180, 32
        %v1184 = vpop.permute.xlu0 %1183
        %v1186 = vmul.f32 %v1179, %v1184
        %1188 = vrot.lane.b32.xlu0 %v1186, 32
        %v1189 = vpop.permute.xlu0 %1188
        %v1191 = vadd.f32 %v1181, %v1189
        %v1192 = vtanh.pop %v1191
        %1194 = vrot.lane.b32.xlu0 %v1192, 32
        %v1195 = vpop.permute.xlu0 %1194
        %v1197 = vmul.f32 %v1179, %v1195
        %v1198 = vpack.c.bf16 %v1160, %v1160
        %v1199 = vpack.c.bf16 %v1197, %v1197
        %1201 = vrot.lane.b32.xlu0 %v1198, 64
        %v1202 = vpop.permute.xlu0 %1201
        %1204 = vst.msk [vmem:[#allocation2 + $0xc] sm:$0xf] %vm808, %v1202
        %1206 = vrot.lane.b32.xlu0 %v1199, 96
        %v1207 = vpop.permute.xlu0 %1206
        %1209 = vst.msk [vmem:[#allocation2 + $0x10] sm:$0xf] %vm814, %v1207
        %v1210 = vunpack.c.l.b16 %v1198
        %v1211 = vpack.c.b16 %v1210, %v1210
        %1212 = vrot.lane.b32.xlu0 %v1211, 64
        %v1213 = vpop.permute.xlu0 %1212
        %v1214 = vunpack.c.l.b16 %v1199
        %v1215 = vpack.c.b16 %v1214, %v1214
        %1216 = vrot.lane.b32.xlu0 %v1215, 96
        %v1217 = vpop.permute.xlu0 %1216
        %v1220 = vsel %vm824, %v1213, %v1217
        %v1221 = vsel %vm566, %v1220, 0
        %1223 = vmatpush.bf16.msra.mxu0 0
        %1224 = vmatpush.bf16.msra.mxu0 0
        %1225 = vmatpush.bf16.msra.mxu0 0
        %1226 = vmatpush.bf16.msra.mxu0 0
        %1227 = vmatpush.bf16.msra.mxu0 %v683
        %1228 = vmatpush.bf16.msra.mxu0 %v681
        %1229 = vmatpush.bf16.msra.mxu0 %v679
        %1230 = vmatpush.bf16.msra.mxu0 %v677
        %1231 = vmatmul.bf16.gmra.mxu0 %v1221
        %v1232 = vpop.f32.mrf.mxu0
        %v1233 = vadd.f32 0.0, %v1232
        %v1234 = vpop.f32.mrf.mxu0
        %1235 = vdwg.mxu0
        %1236 = vmatpush.bf16.msra.mxu0 0
        %1237 = vmatpush.bf16.msra.mxu0 0
        %1238 = vmatpush.bf16.msra.mxu0 0
        %1239 = vmatpush.bf16.msra.mxu0 0
        %1240 = vmatpush.bf16.msra.mxu0 %v684
        %1241 = vmatpush.bf16.msra.mxu0 %v682
        %1242 = vmatpush.bf16.msra.mxu0 %v680
        %1243 = vmatpush.bf16.msra.mxu0 %v678
        %1244 = vmatmul.bf16.gmra.mxu0 %v1221
        %v1245 = vpop.f32.mrf.mxu0
        %v1246 = vadd.f32 0.0, %v1245
        %v1247 = vpop.f32.mrf.mxu0
        %1248 = vdwg.mxu0
        %v1249 = vld [vmem:[#allocation3 + $0x20] sm:$0xf]
        %v1250 = vunpack.c.l.bf16 %v1249
        %v1251 = vadd.f32 %v1233, %v1250
        %v1252 = vld [vmem:[#allocation3 + $0x1c] sm:$0xf]
        %v1253 = vunpack.c.l.bf16 %v1252
        %v1254 = vadd.f32 %v1246, %v1253
        %v1255 = vxor.u32 %v1251, 2147483648
        %v1256 = vmul.f32 %v1255, 1.442695
        %v1257 = vpow.pop %v1256
        %v1258 = vadd.f32 %v1257, 1.0
        %v1259 = vrcp.pop %v1258
        %v1260 = vmul.f32 %v1258, %v1259
        %v1261 = vsub.f32 1.0, %v1260
        %v1262 = vmul.f32 %v1259, %v1261
        %v1263 = vadd.f32 %v1259, %v1262
        %vm1264 = vweird.f32 %v1258
        %vm1265 = vweird.f32 %v1259
        %vm1266 = vmor %vm1264, %vm1265
        %v1267 = vsel %vm1266, %v1259, %v1263
        %v1268 = vand.u32 2147483647, %v1258
        %vm1269 = vcmp.eq.f32.partialorder %v1268, 8.507059e+37
        %v1270 = vand.u32 %v1258, 2147483648
        %v1271 = vor.u32 1.1754944e-38, %v1270
        %v1272 = vsel %vm1269, %v1271, %v1267
        %v1273 = vmul.f32 1.0, %v1272
        %v1274 = vtanh.pop %v1251
        %v1275 = vmul.f32 %v1273, %v1154
        %1277 = vrot.lane.b32.xlu0 %v1274, 32
        %v1278 = vpop.permute.xlu0 %1277
        %v1280 = vmul.f32 %v1273, %v1278
        %1282 = vrot.lane.b32.xlu0 %v1280, 32
        %v1283 = vpop.permute.xlu0 %1282
        %v1285 = vadd.f32 %v1275, %v1283
        %v1286 = vtanh.pop %v1285
        %1288 = vrot.lane.b32.xlu0 %v1286, 32
        %v1289 = vpop.permute.xlu0 %1288
        %v1291 = vmul.f32 %v1273, %v1289
        %v1292 = vxor.u32 %v1254, 2147483648
        %v1293 = vmul.f32 %v1292, 1.442695
        %v1294 = vpow.pop %v1293
        %v1295 = vadd.f32 %v1294, 1.0
        %v1296 = vrcp.pop %v1295
        %v1297 = vmul.f32 %v1295, %v1296
        %v1298 = vsub.f32 1.0, %v1297
        %v1299 = vmul.f32 %v1296, %v1298
        %v1300 = vadd.f32 %v1296, %v1299
        %vm1301 = vweird.f32 %v1295
        %vm1302 = vweird.f32 %v1296
        %vm1303 = vmor %vm1301, %vm1302
        %v1304 = vsel %vm1303, %v1296, %v1300
        %v1305 = vand.u32 2147483647, %v1295
        %vm1306 = vcmp.eq.f32.partialorder %v1305, 8.507059e+37
        %v1307 = vand.u32 %v1295, 2147483648
        %v1308 = vor.u32 1.1754944e-38, %v1307
        %v1309 = vsel %vm1306, %v1308, %v1304
        %v1310 = vmul.f32 1.0, %v1309
        %v1311 = vtanh.pop %v1254
        %v1312 = vmul.f32 %v1310, %v1191
        %1314 = vrot.lane.b32.xlu0 %v1311, 32
        %v1315 = vpop.permute.xlu0 %1314
        %v1317 = vmul.f32 %v1310, %v1315
        %1319 = vrot.lane.b32.xlu0 %v1317, 32
        %v1320 = vpop.permute.xlu0 %1319
        %v1322 = vadd.f32 %v1312, %v1320
        %v1323 = vtanh.pop %v1322
        %1325 = vrot.lane.b32.xlu0 %v1323, 32
        %v1326 = vpop.permute.xlu0 %1325
        %v1328 = vmul.f32 %v1310, %v1326
        %v1329 = vpack.c.bf16 %v1291, %v1291
        %v1330 = vpack.c.bf16 %v1328, %v1328
        %1332 = vrot.lane.b32.xlu0 %v1329, 64
        %v1333 = vpop.permute.xlu0 %1332
        %1335 = vst.msk [vmem:[#allocation2 + $0x10] sm:$0xf] %vm808, %v1333
        %1337 = vrot.lane.b32.xlu0 %v1330, 96
        %v1338 = vpop.permute.xlu0 %1337
        %1340 = vst.msk [vmem:[#allocation2 + $0xc] sm:$0xf] %vm814, %v1338
        %v1341 = vunpack.c.l.b16 %v1329
        %v1342 = vpack.c.b16 %v1341, %v1341
        %1343 = vrot.lane.b32.xlu0 %v1342, 64
        %v1344 = vpop.permute.xlu0 %1343
        %v1345 = vunpack.c.l.b16 %v1330
        %v1346 = vpack.c.b16 %v1345, %v1345
        %1347 = vrot.lane.b32.xlu0 %v1346, 96
        %v1348 = vpop.permute.xlu0 %1347
        %v1351 = vsel %vm824, %v1344, %v1348
        %v1352 = vsel %vm566, %v1351, 0
        %1354 = vmatpush.bf16.msra.mxu0 0
        %1355 = vmatpush.bf16.msra.mxu0 0
        %1356 = vmatpush.bf16.msra.mxu0 0
        %1357 = vmatpush.bf16.msra.mxu0 0
        %1358 = vmatpush.bf16.msra.mxu0 %v683
        %1359 = vmatpush.bf16.msra.mxu0 %v681
        %1360 = vmatpush.bf16.msra.mxu0 %v679
        %1361 = vmatpush.bf16.msra.mxu0 %v677
        %1362 = vmatmul.bf16.gmra.mxu0 %v1352
        %v1363 = vpop.f32.mrf.mxu0
        %v1364 = vadd.f32 0.0, %v1363
        %v1365 = vpop.f32.mrf.mxu0
        %1366 = vdwg.mxu0
        %1367 = vmatpush.bf16.msra.mxu0 0
        %1368 = vmatpush.bf16.msra.mxu0 0
        %1369 = vmatpush.bf16.msra.mxu0 0
        %1370 = vmatpush.bf16.msra.mxu0 0
        %1371 = vmatpush.bf16.msra.mxu0 %v684
        %1372 = vmatpush.bf16.msra.mxu0 %v682
        %1373 = vmatpush.bf16.msra.mxu0 %v680
        %1374 = vmatpush.bf16.msra.mxu0 %v678
        %1375 = vmatmul.bf16.gmra.mxu0 %v1352
        %v1376 = vpop.f32.mrf.mxu0
        %v1377 = vadd.f32 0.0, %v1376
        %v1378 = vpop.f32.mrf.mxu0
        %1379 = vdwg.mxu0
        %v1380 = vld [vmem:[#allocation3 + $0x28] sm:$0xf]
        %v1381 = vunpack.c.l.bf16 %v1380
        %v1382 = vadd.f32 %v1364, %v1381
        %v1383 = vld [vmem:[#allocation3 + $0x14] sm:$0xf]
        %v1384 = vunpack.c.l.bf16 %v1383
        %v1385 = vadd.f32 %v1377, %v1384
        %v1386 = vxor.u32 %v1382, 2147483648
        %v1387 = vmul.f32 %v1386, 1.442695
        %v1388 = vpow.pop %v1387
        %v1389 = vadd.f32 %v1388, 1.0
        %v1390 = vrcp.pop %v1389
        %v1391 = vmul.f32 %v1389, %v1390
        %v1392 = vsub.f32 1.0, %v1391
        %v1393 = vmul.f32 %v1390, %v1392
        %v1394 = vadd.f32 %v1390, %v1393
        %vm1395 = vweird.f32 %v1389
        %vm1396 = vweird.f32 %v1390
        %vm1397 = vmor %vm1395, %vm1396
        %v1398 = vsel %vm1397, %v1390, %v1394
        %v1399 = vand.u32 2147483647, %v1389
        %vm1400 = vcmp.eq.f32.partialorder %v1399, 8.507059e+37
        %v1401 = vand.u32 %v1389, 2147483648
        %v1402 = vor.u32 1.1754944e-38, %v1401
        %v1403 = vsel %vm1400, %v1402, %v1398
        %v1404 = vmul.f32 1.0, %v1403
        %v1405 = vtanh.pop %v1382
        %v1406 = vmul.f32 %v1404, %v1285
        %1408 = vrot.lane.b32.xlu0 %v1405, 32
        %v1409 = vpop.permute.xlu0 %1408
        %v1411 = vmul.f32 %v1404, %v1409
        %1413 = vrot.lane.b32.xlu0 %v1411, 32
        %v1414 = vpop.permute.xlu0 %1413
        %v1416 = vadd.f32 %v1406, %v1414
        %v1417 = vtanh.pop %v1416
        %1419 = vrot.lane.b32.xlu0 %v1417, 32
        %v1420 = vpop.permute.xlu0 %1419
        %v1422 = vmul.f32 %v1404, %v1420
        %v1423 = vxor.u32 %v1385, 2147483648
        %v1424 = vmul.f32 %v1423, 1.442695
        %v1425 = vpow.pop %v1424
        %v1426 = vadd.f32 %v1425, 1.0
        %v1427 = vrcp.pop %v1426
        %v1428 = vmul.f32 %v1426, %v1427
        %v1429 = vsub.f32 1.0, %v1428
        %v1430 = vmul.f32 %v1427, %v1429
        %v1431 = vadd.f32 %v1427, %v1430
        %vm1432 = vweird.f32 %v1426
        %vm1433 = vweird.f32 %v1427
        %vm1434 = vmor %vm1432, %vm1433
        %v1435 = vsel %vm1434, %v1427, %v1431
        %v1436 = vand.u32 2147483647, %v1426
        %vm1437 = vcmp.eq.f32.partialorder %v1436, 8.507059e+37
        %v1438 = vand.u32 %v1426, 2147483648
        %v1439 = vor.u32 1.1754944e-38, %v1438
        %v1440 = vsel %vm1437, %v1439, %v1435
        %v1441 = vmul.f32 1.0, %v1440
        %v1442 = vtanh.pop %v1385
        %v1443 = vmul.f32 %v1441, %v1322
        %1445 = vrot.lane.b32.xlu0 %v1442, 32
        %v1446 = vpop.permute.xlu0 %1445
        %v1448 = vmul.f32 %v1441, %v1446
        %1450 = vrot.lane.b32.xlu0 %v1448, 32
        %v1451 = vpop.permute.xlu0 %1450
        %v1453 = vadd.f32 %v1443, %v1451
        %v1454 = vtanh.pop %v1453
        %1456 = vrot.lane.b32.xlu0 %v1454, 32
        %v1457 = vpop.permute.xlu0 %1456
        %v1459 = vmul.f32 %v1441, %v1457
        %v1460 = vpack.c.bf16 %v1422, %v1422
        %v1461 = vpack.c.bf16 %v1459, %v1459
        %1463 = vrot.lane.b32.xlu0 %v1460, 64
        %v1464 = vpop.permute.xlu0 %1463
        %1466 = vst.msk [vmem:[#allocation2 + $0x14] sm:$0xf] %vm808, %v1464
        %1468 = vrot.lane.b32.xlu0 %v1461, 96
        %v1469 = vpop.permute.xlu0 %1468
        %1471 = vst.msk [vmem:[#allocation2 + $0x8] sm:$0xf] %vm814, %v1469
        %v1472 = vunpack.c.l.b16 %v1460
        %v1473 = vpack.c.b16 %v1472, %v1472
        %1474 = vrot.lane.b32.xlu0 %v1473, 64
        %v1475 = vpop.permute.xlu0 %1474
        %v1476 = vunpack.c.l.b16 %v1461
        %v1477 = vpack.c.b16 %v1476, %v1476
        %1478 = vrot.lane.b32.xlu0 %v1477, 96
        %v1479 = vpop.permute.xlu0 %1478
        %v1482 = vsel %vm824, %v1475, %v1479
        %v1483 = vsel %vm566, %v1482, 0
        %1485 = vmatpush.bf16.msra.mxu0 0
        %1486 = vmatpush.bf16.msra.mxu0 0
        %1487 = vmatpush.bf16.msra.mxu0 0
        %1488 = vmatpush.bf16.msra.mxu0 0
        %1489 = vmatpush.bf16.msra.mxu0 %v683
        %1490 = vmatpush.bf16.msra.mxu0 %v681
        %1491 = vmatpush.bf16.msra.mxu0 %v679
        %1492 = vmatpush.bf16.msra.mxu0 %v677
        %1493 = vmatmul.bf16.gmra.mxu0 %v1483
        %v1494 = vpop.f32.mrf.mxu0
        %v1495 = vadd.f32 0.0, %v1494
        %v1496 = vpop.f32.mrf.mxu0
        %1497 = vdwg.mxu0
        %1498 = vmatpush.bf16.msra.mxu0 0
        %1499 = vmatpush.bf16.msra.mxu0 0
        %1500 = vmatpush.bf16.msra.mxu0 0
        %1501 = vmatpush.bf16.msra.mxu0 0
        %1502 = vmatpush.bf16.msra.mxu0 %v684
        %1503 = vmatpush.bf16.msra.mxu0 %v682
        %1504 = vmatpush.bf16.msra.mxu0 %v680
        %1505 = vmatpush.bf16.msra.mxu0 %v678
        %1506 = vmatmul.bf16.gmra.mxu0 %v1483
        %v1507 = vpop.f32.mrf.mxu0
        %v1508 = vadd.f32 0.0, %v1507
        %v1509 = vpop.f32.mrf.mxu0
        %1510 = vdwg.mxu0
        %v1511 = vld [vmem:[#allocation3 + $0x30] sm:$0xf]
        %v1512 = vunpack.c.l.bf16 %v1511
        %v1513 = vadd.f32 %v1495, %v1512
        %v1514 = vld [vmem:[#allocation3 + $0xc] sm:$0xf]
        %v1515 = vunpack.c.l.bf16 %v1514
        %v1516 = vadd.f32 %v1508, %v1515
        %v1517 = vxor.u32 %v1513, 2147483648
        %v1518 = vmul.f32 %v1517, 1.442695
        %v1519 = vpow.pop %v1518
        %v1520 = vadd.f32 %v1519, 1.0
        %v1521 = vrcp.pop %v1520
        %v1522 = vmul.f32 %v1520, %v1521
        %v1523 = vsub.f32 1.0, %v1522
        %v1524 = vmul.f32 %v1521, %v1523
        %v1525 = vadd.f32 %v1521, %v1524
        %vm1526 = vweird.f32 %v1520
        %vm1527 = vweird.f32 %v1521
        %vm1528 = vmor %vm1526, %vm1527
        %v1529 = vsel %vm1528, %v1521, %v1525
        %v1530 = vand.u32 2147483647, %v1520
        %vm1531 = vcmp.eq.f32.partialorder %v1530, 8.507059e+37
        %v1532 = vand.u32 %v1520, 2147483648
        %v1533 = vor.u32 1.1754944e-38, %v1532
        %v1534 = vsel %vm1531, %v1533, %v1529
        %v1535 = vmul.f32 1.0, %v1534
        %v1536 = vtanh.pop %v1513
        %v1537 = vmul.f32 %v1535, %v1416
        %1539 = vrot.lane.b32.xlu0 %v1536, 32
        %v1540 = vpop.permute.xlu0 %1539
        %v1542 = vmul.f32 %v1535, %v1540
        %1544 = vrot.lane.b32.xlu0 %v1542, 32
        %v1545 = vpop.permute.xlu0 %1544
        %v1547 = vadd.f32 %v1537, %v1545
        %v1548 = vtanh.pop %v1547
        %1550 = vrot.lane.b32.xlu0 %v1548, 32
        %v1551 = vpop.permute.xlu0 %1550
        %v1553 = vmul.f32 %v1535, %v1551
        %v1554 = vxor.u32 %v1516, 2147483648
        %v1555 = vmul.f32 %v1554, 1.442695
        %v1556 = vpow.pop %v1555
        %v1557 = vadd.f32 %v1556, 1.0
        %v1558 = vrcp.pop %v1557
        %v1559 = vmul.f32 %v1557, %v1558
        %v1560 = vsub.f32 1.0, %v1559
        %v1561 = vmul.f32 %v1558, %v1560
        %v1562 = vadd.f32 %v1558, %v1561
        %vm1563 = vweird.f32 %v1557
        %vm1564 = vweird.f32 %v1558
        %vm1565 = vmor %vm1563, %vm1564
        %v1566 = vsel %vm1565, %v1558, %v1562
        %v1567 = vand.u32 2147483647, %v1557
        %vm1568 = vcmp.eq.f32.partialorder %v1567, 8.507059e+37
        %v1569 = vand.u32 %v1557, 2147483648
        %v1570 = vor.u32 1.1754944e-38, %v1569
        %v1571 = vsel %vm1568, %v1570, %v1566
        %v1572 = vmul.f32 1.0, %v1571
        %v1573 = vtanh.pop %v1516
        %v1574 = vmul.f32 %v1572, %v1453
        %1576 = vrot.lane.b32.xlu0 %v1573, 32
        %v1577 = vpop.permute.xlu0 %1576
        %v1579 = vmul.f32 %v1572, %v1577
        %1581 = vrot.lane.b32.xlu0 %v1579, 32
        %v1582 = vpop.permute.xlu0 %1581
        %v1584 = vadd.f32 %v1574, %v1582
        %v1585 = vtanh.pop %v1584
        %1587 = vrot.lane.b32.xlu0 %v1585, 32
        %v1588 = vpop.permute.xlu0 %1587
        %v1590 = vmul.f32 %v1572, %v1588
        %v1591 = vpack.c.bf16 %v1553, %v1553
        %v1592 = vpack.c.bf16 %v1590, %v1590
        %1594 = vrot.lane.b32.xlu0 %v1591, 64
        %v1595 = vpop.permute.xlu0 %1594
        %1597 = vst.msk [vmem:[#allocation2 + $0x18] sm:$0xf] %vm808, %v1595
        %1599 = vrot.lane.b32.xlu0 %v1592, 96
        %v1600 = vpop.permute.xlu0 %1599
        %1602 = vst.msk [vmem:[#allocation2 + $0x4] sm:$0xf] %vm814, %v1600
        %v1603 = vunpack.c.l.b16 %v1591
        %v1604 = vpack.c.b16 %v1603, %v1603
        %1605 = vrot.lane.b32.xlu0 %v1604, 64
        %v1606 = vpop.permute.xlu0 %1605
        %v1607 = vunpack.c.l.b16 %v1592
        %v1608 = vpack.c.b16 %v1607, %v1607
        %1609 = vrot.lane.b32.xlu0 %v1608, 96
        %v1610 = vpop.permute.xlu0 %1609
        %v1613 = vsel %vm824, %v1606, %v1610
        %v1614 = vsel %vm566, %v1613, 0
        %1616 = vmatpush.bf16.msra.mxu0 0
        %1617 = vmatpush.bf16.msra.mxu0 0
        %1618 = vmatpush.bf16.msra.mxu0 0
        %1619 = vmatpush.bf16.msra.mxu0 0
        %1620 = vmatpush.bf16.msra.mxu0 %v683
        %1621 = vmatpush.bf16.msra.mxu0 %v681
        %1622 = vmatpush.bf16.msra.mxu0 %v679
        %1623 = vmatpush.bf16.msra.mxu0 %v677
        %1624 = vmatmul.bf16.gmra.mxu0 %v1614
        %v1625 = vpop.f32.mrf.mxu0
        %v1626 = vadd.f32 0.0, %v1625
        %v1627 = vpop.f32.mrf.mxu0
        %1628 = vdwg.mxu0
        %1629 = vmatpush.bf16.msra.mxu0 0
        %1630 = vmatpush.bf16.msra.mxu0 0
        %1631 = vmatpush.bf16.msra.mxu0 0
        %1632 = vmatpush.bf16.msra.mxu0 0
        %1633 = vmatpush.bf16.msra.mxu0 %v684
        %1634 = vmatpush.bf16.msra.mxu0 %v682
        %1635 = vmatpush.bf16.msra.mxu0 %v680
        %1636 = vmatpush.bf16.msra.mxu0 %v678
        %1637 = vmatmul.bf16.gmra.mxu0 %v1614
        %v1638 = vpop.f32.mrf.mxu0
        %v1639 = vadd.f32 0.0, %v1638
        %v1640 = vpop.f32.mrf.mxu0
        %1641 = vdwg.mxu0
        %v1642 = vld [vmem:[#allocation3 + $0x38] sm:$0xf]
        %v1643 = vunpack.c.l.bf16 %v1642
        %v1644 = vadd.f32 %v1626, %v1643
        %v1645 = vld [vmem:[#allocation3 + $0x4] sm:$0xf]
        %v1646 = vunpack.c.l.bf16 %v1645
        %v1647 = vadd.f32 %v1639, %v1646
        %v1648 = vxor.u32 %v1644, 2147483648
        %v1649 = vmul.f32 %v1648, 1.442695
        %v1650 = vpow.pop %v1649
        %v1651 = vadd.f32 %v1650, 1.0
        %v1652 = vrcp.pop %v1651
        %v1653 = vmul.f32 %v1651, %v1652
        %v1654 = vsub.f32 1.0, %v1653
        %v1655 = vmul.f32 %v1652, %v1654
        %v1656 = vadd.f32 %v1652, %v1655
        %vm1657 = vweird.f32 %v1651
        %vm1658 = vweird.f32 %v1652
        %vm1659 = vmor %vm1657, %vm1658
        %v1660 = vsel %vm1659, %v1652, %v1656
        %v1661 = vand.u32 2147483647, %v1651
        %vm1662 = vcmp.eq.f32.partialorder %v1661, 8.507059e+37
        %v1663 = vand.u32 %v1651, 2147483648
        %v1664 = vor.u32 1.1754944e-38, %v1663
        %v1665 = vsel %vm1662, %v1664, %v1660
        %v1666 = vmul.f32 1.0, %v1665
        %v1667 = vtanh.pop %v1644
        %v1668 = vmul.f32 %v1666, %v1547
        %1670 = vrot.lane.b32.xlu0 %v1667, 32
        %v1671 = vpop.permute.xlu0 %1670
        %v1673 = vmul.f32 %v1666, %v1671
        %1675 = vrot.lane.b32.xlu0 %v1673, 32
        %v1676 = vpop.permute.xlu0 %1675
        %v1678 = vadd.f32 %v1668, %v1676
        %v1679 = vtanh.pop %v1678
        %1681 = vrot.lane.b32.xlu0 %v1679, 32
        %v1682 = vpop.permute.xlu0 %1681
        %v1684 = vmul.f32 %v1666, %v1682
        %v1685 = vxor.u32 %v1647, 2147483648
        %v1686 = vmul.f32 %v1685, 1.442695
        %v1687 = vpow.pop %v1686
        %v1688 = vadd.f32 %v1687, 1.0
        %v1689 = vrcp.pop %v1688
        %v1690 = vmul.f32 %v1688, %v1689
        %v1691 = vsub.f32 1.0, %v1690
        %v1692 = vmul.f32 %v1689, %v1691
        %v1693 = vadd.f32 %v1689, %v1692
        %vm1694 = vweird.f32 %v1688
        %vm1695 = vweird.f32 %v1689
        %vm1696 = vmor %vm1694, %vm1695
        %v1697 = vsel %vm1696, %v1689, %v1693
        %v1698 = vand.u32 2147483647, %v1688
        %vm1699 = vcmp.eq.f32.partialorder %v1698, 8.507059e+37
        %v1700 = vand.u32 %v1688, 2147483648
        %v1701 = vor.u32 1.1754944e-38, %v1700
        %v1702 = vsel %vm1699, %v1701, %v1697
        %v1703 = vmul.f32 1.0, %v1702
        %v1704 = vtanh.pop %v1647
        %v1705 = vmul.f32 %v1703, %v1584
        %1707 = vrot.lane.b32.xlu0 %v1704, 32
        %v1708 = vpop.permute.xlu0 %1707
        %v1710 = vmul.f32 %v1703, %v1708
        %1712 = vrot.lane.b32.xlu0 %v1710, 32
        %v1713 = vpop.permute.xlu0 %1712
        %v1715 = vadd.f32 %v1705, %v1713
        %v1716 = vtanh.pop %v1715
        %1718 = vrot.lane.b32.xlu0 %v1716, 32
        %v1719 = vpop.permute.xlu0 %1718
        %v1721 = vmul.f32 %v1703, %v1719
        %v1722 = vpack.c.bf16 %v1684, %v1684
        %v1723 = vpack.c.bf16 %v1721, %v1721
        %1725 = vrot.lane.b32.xlu0 %v1722, 64
        %v1726 = vpop.permute.xlu0 %1725
        %1728 = vst.msk [vmem:[#allocation2 + $0x1c] sm:$0xf] %vm808, %v1726
        %1730 = vrot.lane.b32.xlu0 %v1723, 96
        %v1731 = vpop.permute.xlu0 %1730
        %1733 = vst.msk [vmem:[#allocation2] sm:$0xf] %vm814, %v1731
        %p1734 = scmp.eq.s32.totalorder %s25, 1
        // Predicated region
        $region65: #{graves_forward.1} parent=51 // pred_check
          %p1735 = pneg %p1734
        $region66: #{graves_forward.1} parent=51 // pred_check_branch
          %1737 = sbr.rel (%p1735) target = $region68
        $region67: #{graves_forward.1} parent=51 // pred_region
          %v1738 = vld [vmem:[#allocation2] sm:$0xf]
          %v1739 = vld [vmem:[#allocation2 + $0x4] sm:$0xf]
          %v1740 = vld [vmem:[#allocation2 + $0x8] sm:$0xf]
          %v1741 = vld [vmem:[#allocation2 + $0xc] sm:$0xf]
          %v1742 = vld [vmem:[#allocation2 + $0x10] sm:$0xf]
          %v1743 = vld [vmem:[#allocation2 + $0x14] sm:$0xf]
          %v1744 = vld [vmem:[#allocation2 + $0x18] sm:$0xf]
          %v1745 = vld [vmem:[#allocation2 + $0x1c] sm:$0xf]
          %v1746 = vld [vmem:[%s6] sm:$0xf]
          %v1747 = vld [vmem:[%s6 + $0x4] sm:$0xf]
          %v1748 = vld [vmem:[%s6 + $0x8] sm:$0xf]
          %v1749 = vld [vmem:[%s6 + $0xc] sm:$0xf]
          %v1750 = vld [vmem:[%s6 + $0x10] sm:$0xf]
          %v1751 = vld [vmem:[%s6 + $0x14] sm:$0xf]
          %v1752 = vld [vmem:[%s6 + $0x18] sm:$0xf]
          %v1753 = vld [vmem:[%s6 + $0x1c] sm:$0xf]
          %v1754 = vld [vmem:[%s7] sm:$0x1]
          %v1756 = vperm.slane %v1754, 0
          %v1766 = vunpack.c.l.b16 %v1738
          %v1767 = vunpack.c.l.b16 %v1739
          %v1768 = vunpack.c.l.b16 %v1740
          %v1769 = vunpack.c.l.b16 %v1741
          %v1770 = vunpack.c.l.b16 %v1742
          %v1771 = vunpack.c.l.b16 %v1743
          %v1772 = vunpack.c.l.b16 %v1744
          %v1773 = vunpack.c.l.b16 %v1745
          %v1774 = vpack.c.b16 %v1767, %v1766
          %v1775 = vpack.c.b16 %v1769, %v1768
          %v1776 = vpack.c.b16 %v1771, %v1770
          %v1777 = vpack.c.b16 %v1773, %v1772
          %v1786 = vunpack.c.l.b16 %v1746
          %v1787 = vunpack.c.l.b16 %v1747
          %v1788 = vunpack.c.l.b16 %v1748
          %v1789 = vunpack.c.l.b16 %v1749
          %v1790 = vunpack.c.l.b16 %v1750
          %v1791 = vunpack.c.l.b16 %v1751
          %v1792 = vunpack.c.l.b16 %v1752
          %v1793 = vunpack.c.l.b16 %v1753
          %v1794 = vpack.c.b16 %v1787, %v1786
          %v1795 = vpack.c.b16 %v1789, %v1788
          %v1796 = vpack.c.b16 %v1791, %v1790
          %v1797 = vpack.c.b16 %v1793, %v1792
          %v1803 = vsel %vm566, %v1774, 0
          %v1806 = vsel %vm566, %v1775, 0
          %v1809 = vsel %vm566, %v1776, 0
          %v1812 = vsel %vm566, %v1777, 0
          %1814 = vmatpush.bf16.msra.mxu0 0
          %1815 = vmatpush.bf16.msra.mxu0 0
          %1816 = vmatpush.bf16.msra.mxu0 0
          %1817 = vmatpush.bf16.msra.mxu0 0
          %1818 = vmatpush.bf16.msra.mxu0 %v1797
          %1819 = vmatpush.bf16.msra.mxu0 %v1796
          %1820 = vmatpush.bf16.msra.mxu0 %v1795
          %1821 = vmatpush.bf16.msra.mxu0 %v1794
          %1822 = vmatmul.bf16.gmra.mxu0 %v1803
          %v1823 = vpop.f32.mrf.mxu0
          %v1824 = vadd.f32 %v1756, %v1823
          %v1825 = vpop.f32.mrf.mxu0
          %v1826 = vadd.f32 %v1756, %v1825
          %1827 = vmatmul.bf16.gmra.mxu0 %v1806
          %v1828 = vpop.f32.mrf.mxu0
          %v1829 = vadd.f32 %v1756, %v1828
          %v1830 = vpop.f32.mrf.mxu0
          %v1831 = vadd.f32 %v1756, %v1830
          %1832 = vmatmul.bf16.gmra.mxu0 %v1809
          %v1833 = vpop.f32.mrf.mxu0
          %v1834 = vadd.f32 %v1756, %v1833
          %v1835 = vpop.f32.mrf.mxu0
          %v1836 = vadd.f32 %v1756, %v1835
          %1837 = vmatmul.bf16.gmra.mxu0 %v1812
          %v1838 = vpop.f32.mrf.mxu0
          %v1839 = vadd.f32 %v1756, %v1838
          %v1840 = vpop.f32.mrf.mxu0
          %v1841 = vadd.f32 %v1756, %v1840
          %1842 = vdwg.mxu0
          %1843 = vst [vmem:[%s8] sm:$0xff] %v1824
          %1844 = vst [vmem:[%s8 + $0x8] sm:$0xff] %v1826
          %1845 = vst [vmem:[%s8 + $0x10] sm:$0xff] %v1829
          %1846 = vst [vmem:[%s8 + $0x18] sm:$0xff] %v1831
          %1847 = vst [vmem:[%s8 + $0x20] sm:$0xff] %v1834
          %1848 = vst [vmem:[%s8 + $0x28] sm:$0xff] %v1836
          %1849 = vst [vmem:[%s8 + $0x30] sm:$0xff] %v1839
          %1850 = vst [vmem:[%s8 + $0x38] sm:$0xff] %v1841
        $region68: #{graves_forward.1} parent=51 // pred_fallthru
          _
        // Predicated region
        $region69: #{graves_forward.1} parent=51 // pred_check
          %p1851 = pneg %p221
        $region70: #{graves_forward.1} parent=51 // pred_check_branch
          %1853 = sbr.rel (%p1851) target = $region72
        $region71: #{graves_forward.1} parent=51 // pred_region
          _
        $region72: #{graves_forward.1} parent=51 // pred_fallthru
          _
        // Predicated region
        $region73: #{graves_forward.1} parent=51 // pred_check
          %p1854 = pneg %p221
        $region74: #{graves_forward.1} parent=51 // pred_check_branch
          %1856 = sbr.rel (%p1854) target = $region76
        $region75: #{graves_forward.1} parent=51 // pred_region
          _
        $region76: #{graves_forward.1} parent=51 // pred_fallthru
          _
      $region52: #{graves_forward.1} parent=5 // pred_fallthru
        _
      %p1857 = scmp.le.s32.totalorder 2, %s20
      // Predicated region
      $region77: #{graves_forward.1} parent=5 // pred_check
        %p1858 = pneg %p1857
      $region78: #{graves_forward.1} parent=5 // pred_check_branch
        %1860 = sbr.rel (%p1858) target = $region80
      $region79: #{graves_forward.1} parent=5 // pred_region
        %s1861 = ssub.s32 %s20, 2
      $region80: #{graves_forward.1} parent=5 // pred_fallthru
        _
    $region6: #{graves_forward.1} parent=1 // loop_footer
      %s24 = sadd.s32 1, %s20
    $region7: #{graves_forward.1} parent=1 // loop_footer_branch
      %19 = sbr.rel target = $region3
    $region8: #{graves_forward.1} parent=1 // loop_exit
      _
    %1862 = vsyncpa [#allocation5], 1
    %s1863 = scalar_lea.sflag [#allocation5], 1
    %1864 = vsyncpa %s1863, 1
    %1865 = vsyncpa [#allocation7], 1
    %s1866 = scalar_lea.sflag [#allocation7], 1
    %1867 = vsyncpa %s1866, 1

</llo_original>
